<compile_context>
chip_gen: v6e
topology: v6e:2x2x1
jax: 0.10.0
libtpu: 0.0.40
codegen_flags: <defaults>
</compile_context>

<pallas_src>
import numpy as np
import jax
import jax.numpy as jnp
from jax.experimental import pallas as pl
from jax.experimental.pallas import tpu as pltpu

# ----------------------------- static shapes --------------------------------
N = 2               # batch
C_IN = 10           # fc1 in_channels
C1 = 6              # fc1 out_channels
C2 = 16             # fc2 out_channels
H, W = 12, 12       # chosen so 16 * ((H-2)//2) * (W//2) == 480
H1 = H - 1          # rows after conv1 (kernel (2,1))
H2 = H - 2          # rows after conv2
HP, WP = H2 // 2, W // 2
FLAT = C2 * HP * WP             # 480
LANES = 16                      # uniform lane width for weights/intermediates

SROWS = H1 * W                  # 132 valid conv1 rows per sample
STRIDE = ((SROWS + 7) // 8) * 8  # 136: 8-aligned per-sample row stride
ROWS1 = N * STRIDE              # 272 conv1 output rows (batch folded into M)
ROWS2 = ROWS1 - W               # 260 conv2 output rows (extra rows are garbage
                                #      but never selected)
ZROWS = ROWS2 - (W + 1)         # 247 pooled-max intermediate rows

# 8-aligned offsets inside the packed-constants array (rows x 16 lanes)
OFF_W1 = 0                       # (2*C_IN, 16) fused conv1 weight
OFF_B1 = 24                      # (1, 16)      conv1 bias
OFF_W2A = 32                     # (16, 16)     conv2 tap kh=0
OFF_W2B = 48                     # (16, 16)     conv2 tap kh=1
OFF_B2 = 64                      # (1, 16)      conv2 bias
OFF_B3 = 72                      # (1, 16)      fc3 bias at lane 0 only
OFF_A = 80                       # (ZROWS, 16)  fc3 weight scattered to pooled rows
PACK_ROWS = OFF_A + ((ZROWS + 7) // 8) * 8   # 328


# ------------------- one-time (per weight update) packing --------------------
def pack_params(params):
    """Build the single lane-uniform constant operand. Run once per weights."""
    w1, b1, w2, b2, w3, b3 = params
    f32 = jnp.float32

    # conv1 fused weight (2*C_IN, 16), lane-padded past C1 with zeros
    w1f = jnp.concatenate([w1[:, :, 0, 0].T, w1[:, :, 1, 0].T], axis=0)  # (20,6)
    w1seg = jnp.zeros((OFF_B1 - OFF_W1, LANES), f32).at[:2 * C_IN, :C1].set(w1f)
    b1seg = jnp.zeros((OFF_W2A - OFF_B1, LANES), f32).at[0, :C1].set(b1)
    # conv2 per-tap weights; zero rows past C1 so y1's padded lanes contribute 0
    w2aseg = jnp.zeros((OFF_W2B - OFF_W2A, LANES), f32).at[:C1, :].set(w2[:, :, 0, 0].T)
    w2bseg = jnp.zeros((OFF_B2 - OFF_W2B, LANES), f32).at[:C1, :].set(w2[:, :, 1, 0].T)
    b2seg = jnp.zeros((OFF_B3 - OFF_B2, LANES), f32).at[0, :C2].set(b2)
    b3seg = jnp.zeros((OFF_A - OFF_B3, LANES), f32).at[0, 0].set(b3[0])

    # fc3 weight scattered to pooled (even-h, even-w) row positions:
    # A[r, c] = w3[0, c*HP*WP + hp*WP + wp]  iff  r == s*STRIDE + 2*hp*W + 2*wp.
    w3m = w3.reshape(C2, HP * WP).T.astype(f32)                     # (30, 16)
    sel_rows = np.array(
        [s * STRIDE + (2 * hp) * W + 2 * wp
         for s in range(N) for hp in range(HP) for wp in range(WP)], np.int32)
    aseg = jnp.zeros((PACK_ROWS - OFF_A, LANES), f32).at[sel_rows, :].set(
        jnp.tile(w3m, (N, 1)))

    return jnp.concatenate([w1seg, b1seg, w2aseg, w2bseg, b2seg, b3seg, aseg],
                           axis=0)                                   # (328, 16)


# --------------------------------- kernel ------------------------------------
def _net_kernel(lhs1_ref, pack_ref, o_ref, y1_s, y2_s):
    # ---- conv1: both (2,1) taps in ONE matmul, + bias + ReLU.
    #      max_pool2d(., (1,1)) is the identity.
    w1k = pack_ref[pl.ds(OFF_W1, 2 * C_IN), :]
    b1k = pack_ref[pl.ds(OFF_B1, 1), :]
    y1 = jnp.dot(lhs1_ref[...], w1k, preferred_element_type=jnp.float32) + b1k
    y1_s[...] = jnp.maximum(y1, 0.0)                       # (ROWS1, 16)

    # ---- conv2: row-shifted taps via ref slices, + bias + ReLU.
    #      (kept as two dots: K-fusing the taps needs a lane-16 concat shuffle)
    w2ak = pack_ref[pl.ds(OFF_W2A, LANES), :]
    w2bk = pack_ref[pl.ds(OFF_W2B, LANES), :]
    b2k = pack_ref[pl.ds(OFF_B2, 1), :]
    top2 = y1_s[pl.ds(0, ROWS2), :]
    bot2 = y1_s[pl.ds(W, ROWS2), :]
    y2 = (jnp.dot(top2, w2ak, preferred_element_type=jnp.float32)
          + jnp.dot(bot2, w2bk, preferred_element_type=jnp.float32) + b2k)
    y2_s[...] = jnp.maximum(y2, 0.0)                       # (ROWS2, 16)

    # ---- 2x2 max-pool as elementwise max of four row-shifted windows (VPU),
    #      fc3 fused in: A holds the fc3 weight at pooled rows, zeros elsewhere.
    z = jnp.maximum(
        jnp.maximum(y2_s[pl.ds(0, ZROWS), :], y2_s[pl.ds(1, ZROWS), :]),
        jnp.maximum(y2_s[pl.ds(W, ZROWS), :], y2_s[pl.ds(W + 1, ZROWS), :]))
    p = z * pack_ref[pl.ds(OFF_A, ZROWS), :]

    # per-sample reduction: static 8-aligned sublane sums (no indicator matmul)
    sums = []
    for s in range(N):
        lo = s * STRIDE
        hi = min(lo + STRIDE, ZROWS)
        sums.append(jnp.sum(p[lo:hi, :], axis=0, keepdims=True))
    m2 = jnp.concatenate(sums, axis=0)                     # (N, 16)

    b3k = pack_ref[pl.ds(OFF_B3, 1), :]                    # b3 at lane 0 only
    out = jnp.sum(m2 + b3k, axis=-1, keepdims=True)        # (N, 1)
    o_ref[...] = jnp.clip(out, -1000.0, 1000.0)            # Hardtanh


# --------------------------------- wrapper ------------------------------------
def net_forward(x_nchw, pack):
    """Jit-able forward: layout plumbing for x + one gridless pallas_call."""
    assert x_nchw.shape == (N, C_IN, H, W)
    f32 = jnp.float32

    # channels-last flattened-spatial: x2d[s, h*W+w, ci] = x[s, ci, h, w]
    x2d = jnp.transpose(x_nchw, (0, 2, 3, 1)).reshape(N, H * W, C_IN)
    # conv1 LHS with both kh taps fused along K, per-sample rows padded to an
    # 8-aligned stride -> (ROWS1, 2*C_IN)
    per = jnp.concatenate([x2d[:, :H1 * W, :], x2d[:, W:, :]], axis=-1)
    per = jnp.pad(per, ((0, 0), (0, STRIDE - SROWS), (0, 0)))
    lhs1 = per.reshape(ROWS1, 2 * C_IN).astype(f32)

    flops = (2 * (ROWS1 * (2 * C_IN) * LANES + 2 * ROWS2 * LANES * LANES)
             + 8 * ZROWS * LANES)
    bytes_accessed = 4 * (ROWS1 * 2 * C_IN + PACK_ROWS * LANES + N)

    return pl.pallas_call(
        _net_kernel,
        out_shape=jax.ShapeDtypeStruct((N, 1), jnp.float32),
        scratch_shapes=[pltpu.VMEM((ROWS1, LANES), jnp.float32),
                        pltpu.VMEM((ROWS2, LANES), jnp.float32)],
        cost_estimate=pl.CostEstimate(flops=flops, transcendentals=0,
                                      bytes_accessed=bytes_accessed),
    )(lhs1, pack)


# --------------------------------- reference ----------------------------------
def ref_forward(x, params):
    """Pure-JAX reference mirroring the PyTorch NCHW semantics."""
    w1, b1, w2, b2, w3, b3 = params
    y1 = (jnp.einsum('oi,nihw->nohw', w1[:, :, 0, 0], x[:, :, :-1, :])
          + jnp.einsum('oi,nihw->nohw', w1[:, :, 1, 0], x[:, :, 1:, :])
          + b1[None, :, None, None])
    y1 = jnp.maximum(y1, 0.0)                      # max_pool2d(., (1,1)) = id
    y2 = (jnp.einsum('oi,nihw->nohw', w2[:, :, 0, 0], y1[:, :, :-1, :])
          + jnp.einsum('oi,nihw->nohw', w2[:, :, 1, 0], y1[:, :, 1:, :])
          + b2[None, :, None, None])
    y2 = jnp.maximum(y2, 0.0)
    n = x.shape[0]
    yp = jnp.max(y2.reshape(n, C2, HP, 2, WP, 2), axis=(3, 5))
    flat = yp.reshape(n, FLAT)
    return jnp.clip(flat @ w3.T + b3, -1000.0, 1000.0)


if __name__ == "__main__":
    key = jax.random.PRNGKey(0)
    kx, k1, k2, k3, k4, k5, k6 = jax.random.split(key, 7)
    x = jax.random.normal(kx, (N, C_IN, H, W), jnp.float32)
    params = (
        0.1 * jax.random.normal(k1, (C1, C_IN, 2, 1), jnp.float32),   # fc1.weight
        0.1 * jax.random.normal(k2, (C1,), jnp.float32),              # fc1.bias
        0.1 * jax.random.normal(k3, (C2, C1, 2, 1), jnp.float32),     # fc2.weight
        0.1 * jax.random.normal(k4, (C2,), jnp.float32),              # fc2.bias
        0.1 * jax.random.normal(k5, (1, FLAT), jnp.float32),          # fc3.weight
        0.1 * jax.random.normal(k6, (1,), jnp.float32),               # fc3.bias
    )

    pack = jax.block_until_ready(pack_params(params))   # once per weight update
    fwd = jax.jit(net_forward)

    out = jax.block_until_ready(fwd(x, pack))
    ref = jax.block_until_ready(ref_forward(x, params))
    assert out.shape == (N, 1), out.shape
    np.testing.assert_allclose(np.asarray(out), np.asarray(ref),
                               rtol=1e-5, atol=1e-5)
    print("KERNEL_OK")
</pallas_src>

<mosaic_0001>
module attributes {stable_mosaic.version = 11 : i64} {
  func.func @_net_kernel(%arg0: memref<272x20xf32, #tpu.memory_space<vmem>>, %arg1: memref<328x16xf32, #tpu.memory_space<vmem>>, %arg2: memref<2x1xf32, #tpu.memory_space<vmem>>, %arg3: memref<272x16xf32, #tpu.memory_space<vmem>>, %arg4: memref<260x16xf32, #tpu.memory_space<vmem>>) attributes {dimension_semantics = [], scalar_prefetch = 0 : i64, scratch_operands = 2 : i64, tpu.core_type = #tpu.core_type<tc>} {
    %c0 = arith.constant 0 : index
    %c0_0 = arith.constant 0 : index
    %0 = vector.load %arg1[%c0, %c0_0] : memref<328x16xf32, #tpu.memory_space<vmem>>, vector<20x16xf32>
    %c24 = arith.constant 24 : index
    %c0_1 = arith.constant 0 : index
    %1 = vector.load %arg1[%c24, %c0_1] : memref<328x16xf32, #tpu.memory_space<vmem>>, vector<1x16xf32>
    %c0_2 = arith.constant 0 : index
    %c0_3 = arith.constant 0 : index
    %2 = vector.load %arg0[%c0_2, %c0_3] : memref<272x20xf32, #tpu.memory_space<vmem>>, vector<272x20xf32>
    %cst = arith.constant dense<0.000000e+00> : vector<272x16xf32>
    %3 = tpu.matmul %2, %0, %cst {dimension_numbers = #tpu.dot_dimension_numbers<[1], [0], [0], [1], [0, 0, 1, 1], [], []>} : vector<272x20xf32>, vector<20x16xf32>, vector<272x16xf32> -> vector<272x16xf32>
    %4 = vector.broadcast %1 : vector<1x16xf32> to vector<272x16xf32>
    %5 = arith.addf %3, %4 : vector<272x16xf32>
    %cst_4 = arith.constant 0.000000e+00 : f32
    %6 = vector.broadcast %cst_4 : f32 to vector<272x16xf32>
    %7 = arith.maximumf %5, %6 : vector<272x16xf32>
    %c0_5 = arith.constant 0 : index
    %c0_6 = arith.constant 0 : index
    %8 = vector.load %arg3[%c0_5, %c0_6] : memref<272x16xf32, #tpu.memory_space<vmem>>, vector<272x16xf32>
    tpu.vector_store %arg3[%c0_5, %c0_6], %7 {strides = array<i32>} : memref<272x16xf32, #tpu.memory_space<vmem>>, vector<272x16xf32>,
    %c32 = arith.constant 32 : index
    %c0_7 = arith.constant 0 : index
    %9 = vector.load %arg1[%c32, %c0_7] : memref<328x16xf32, #tpu.memory_space<vmem>>, vector<16x16xf32>
    %c48 = arith.constant 48 : index
    %c0_8 = arith.constant 0 : index
    %10 = vector.load %arg1[%c48, %c0_8] : memref<328x16xf32, #tpu.memory_space<vmem>>, vector<16x16xf32>
    %c64 = arith.constant 64 : index
    %c0_9 = arith.constant 0 : index
    %11 = vector.load %arg1[%c64, %c0_9] : memref<328x16xf32, #tpu.memory_space<vmem>>, vector<1x16xf32>
    %c0_10 = arith.constant 0 : index
    %c0_11 = arith.constant 0 : index
    %12 = vector.load %arg3[%c0_10, %c0_11] : memref<272x16xf32, #tpu.memory_space<vmem>>, vector<260x16xf32>
    %c12 = arith.constant 12 : index
    %c0_12 = arith.constant 0 : index
    %13 = vector.load %arg3[%c12, %c0_12] : memref<272x16xf32, #tpu.memory_space<vmem>>, vector<260x16xf32>
    %cst_13 = arith.constant dense<0.000000e+00> : vector<260x16xf32>
    %14 = tpu.matmul %12, %9, %cst_13 {dimension_numbers = #tpu.dot_dimension_numbers<[1], [0], [0], [1], [0, 0, 1, 1], [], []>} : vector<260x16xf32>, vector<16x16xf32>, vector<260x16xf32> -> vector<260x16xf32>
    %cst_14 = arith.constant dense<0.000000e+00> : vector<260x16xf32>
    %15 = tpu.matmul %13, %10, %cst_14 {dimension_numbers = #tpu.dot_dimension_numbers<[1], [0], [0], [1], [0, 0, 1, 1], [], []>} : vector<260x16xf32>, vector<16x16xf32>, vector<260x16xf32> -> vector<260x16xf32>
    %16 = arith.addf %14, %15 : vector<260x16xf32>
    %17 = vector.broadcast %11 : vector<1x16xf32> to vector<260x16xf32>
    %18 = arith.addf %16, %17 : vector<260x16xf32>
    %cst_15 = arith.constant 0.000000e+00 : f32
    %19 = vector.broadcast %cst_15 : f32 to vector<260x16xf32>
    %20 = arith.maximumf %18, %19 : vector<260x16xf32>
    %c0_16 = arith.constant 0 : index
    %c0_17 = arith.constant 0 : index
    %21 = vector.load %arg4[%c0_16, %c0_17] : memref<260x16xf32, #tpu.memory_space<vmem>>, vector<260x16xf32>
    tpu.vector_store %arg4[%c0_16, %c0_17], %20 {strides = array<i32>} : memref<260x16xf32, #tpu.memory_space<vmem>>, vector<260x16xf32>,
    %c0_18 = arith.constant 0 : index
    %c0_19 = arith.constant 0 : index
    %22 = vector.load %arg4[%c0_18, %c0_19] : memref<260x16xf32, #tpu.memory_space<vmem>>, vector<247x16xf32>
    %c1 = arith.constant 1 : index
    %c0_20 = arith.constant 0 : index
    %23 = vector.load %arg4[%c1, %c0_20] : memref<260x16xf32, #tpu.memory_space<vmem>>, vector<247x16xf32>
    %24 = arith.maximumf %22, %23 : vector<247x16xf32>
    %c12_21 = arith.constant 12 : index
    %c0_22 = arith.constant 0 : index
    %25 = vector.load %arg4[%c12_21, %c0_22] : memref<260x16xf32, #tpu.memory_space<vmem>>, vector<247x16xf32>
    %c13 = arith.constant 13 : index
    %c0_23 = arith.constant 0 : index
    %26 = vector.load %arg4[%c13, %c0_23] : memref<260x16xf32, #tpu.memory_space<vmem>>, vector<247x16xf32>
    %27 = arith.maximumf %25, %26 : vector<247x16xf32>
    %28 = arith.maximumf %24, %27 : vector<247x16xf32>
    %c80 = arith.constant 80 : index
    %c0_24 = arith.constant 0 : index
    %29 = vector.load %arg1[%c80, %c0_24] : memref<328x16xf32, #tpu.memory_space<vmem>>, vector<247x16xf32>
    %30 = arith.mulf %28, %29 : vector<247x16xf32>
    %31 = vector.extract_strided_slice %30 {offsets = [0, 0], sizes = [136, 16], strides = [1, 1]} : vector<247x16xf32> to vector<136x16xf32>
    %cst_25 = arith.constant dense<0.000000e+00> : vector<16xf32>
    %32 = vector.multi_reduction <add>, %31, %cst_25 [0] : vector<136x16xf32> to vector<16xf32>
    %33 = vector.shape_cast %32 : vector<16xf32> to vector<1x16xf32>
    %34 = vector.extract_strided_slice %30 {offsets = [136, 0], sizes = [111, 16], strides = [1, 1]} : vector<247x16xf32> to vector<111x16xf32>
    %cst_26 = arith.constant dense<0.000000e+00> : vector<16xf32>
    %35 = vector.multi_reduction <add>, %34, %cst_26 [0] : vector<111x16xf32> to vector<16xf32>
    %36 = vector.shape_cast %35 : vector<16xf32> to vector<1x16xf32>
    %37 = tpu.concatenate %33, %36 in 0 : vector<1x16xf32>, vector<1x16xf32> -> vector<2x16xf32>
    %c72 = arith.constant 72 : index
    %c0_27 = arith.constant 0 : index
    %38 = vector.load %arg1[%c72, %c0_27] : memref<328x16xf32, #tpu.memory_space<vmem>>, vector<1x16xf32>
    %39 = vector.broadcast %38 : vector<1x16xf32> to vector<2x16xf32>
    %40 = arith.addf %37, %39 : vector<2x16xf32>
    %cst_28 = arith.constant dense<0.000000e+00> : vector<2xf32>
    %41 = vector.multi_reduction <add>, %40, %cst_28 [1] : vector<2x16xf32> to vector<2xf32>
    %42 = vector.shape_cast %41 : vector<2xf32> to vector<2x1xf32>
    %cst_29 = arith.constant -1.000000e+03 : f32
    %cst_30 = arith.constant 1.000000e+03 : f32
    %43 = vector.broadcast %cst_29 : f32 to vector<2x1xf32>
    %44 = arith.maximumf %43, %42 : vector<2x1xf32>
    %45 = vector.broadcast %cst_30 : f32 to vector<2x1xf32>
    %46 = arith.minimumf %45, %44 : vector<2x1xf32>
    %c0_31 = arith.constant 0 : index
    %c0_32 = arith.constant 0 : index
    %47 = vector.load %arg2[%c0_31, %c0_32] : memref<2x1xf32, #tpu.memory_space<vmem>>, vector<2x1xf32>
    tpu.vector_store %arg2[%c0_31, %c0_32], %46 {strides = array<i32>} : memref<2x1xf32, #tpu.memory_space<vmem>>, vector<2x1xf32>,
    return
  }
}

</mosaic_0001>

<llo_original>
// kernel: net_forward.1
$region0: #{net_forward.1}
  #allocation0 [shape = 'u32[]', space=smem, size = 0x4, offset = 0x4, fixed_abs, tag = 'smem constant byte address 0x4 - core index']
  #allocation1 [shape = 'u32[144,128]{1,0:T(1,128)}', space=vmem, size = 0x12000, scoped, tag = 'internal scratch']
  #allocation2 [shape = 'f32[272,16]{1,0:T(8,128)}', space=vmem, size = 0x22000, scoped, tag = 'scratch operand']
  #allocation3 [shape = 'f32[260,16]{1,0:T(8,128)}', space=vmem, size = 0x21000, scoped, tag = 'scratch operand']
  %s0 = inlined_call_operand.vmem [shape: f32[272,20], index: 0, kind: input, shape index: {}]
  %s1 = inlined_call_operand.vmem [shape: f32[328,16], index: 1, kind: input, shape index: {}]
  %s2 = inlined_call_operand.vmem [shape: f32[2,1], index: 2, kind: output, shape index: {}]
  %s3 = sld [smem:[#allocation0]]
  $region18: #{net_forward.1} parent=0
    _
  %s5 = ssub.s32 1, %s3
  %s6 = scalar_select 0, %s5, %s3
  // Predicated region
  $region2: #{net_forward.1} parent=0 // pred_check
    _
  $region3: #{net_forward.1} parent=0 // pred_check_branch
    %8 = sbr.rel (0) target = $region5
  $region4: #{net_forward.1} parent=0 // pred_region
    _
  $region5: #{net_forward.1} parent=0 // pred_fallthru
    _
  // Predicated region
  $region6: #{net_forward.1} parent=0 // pred_check
    _
  $region7: #{net_forward.1} parent=0 // pred_check_branch
    %10 = sbr.rel (0) target = $region9
  $region8: #{net_forward.1} parent=0 // pred_region
    _
  $region9: #{net_forward.1} parent=0 // pred_fallthru
    _
  %v11 = vld [vmem:[%s1] sm:$0xff]
  %v12 = vld [vmem:[%s1 + $0x8] sm:$0xff]
  %v13 = vld [vmem:[%s1 + $0x10] sm:$0xf]
  %v14 = vld [vmem:[%s1 + $0x18] sm:$0x1]
  %v15 = vld [vmem:[%s0] sm:$0xff]
  %v16 = vld [vmem:[%s0 + $0x8] sm:$0xff]
  %v17 = vld [vmem:[%s0 + $0x10] sm:$0xff]
  %v18 = vld [vmem:[%s0 + $0x18] sm:$0xff]
  %v19 = vld [vmem:[%s0 + $0x20] sm:$0xff]
  %v20 = vld [vmem:[%s0 + $0x28] sm:$0xff]
  %v21 = vld [vmem:[%s0 + $0x30] sm:$0xff]
  %v22 = vld [vmem:[%s0 + $0x38] sm:$0xff]
  %v23 = vld [vmem:[%s0 + $0x40] sm:$0xff]
  %v24 = vld [vmem:[%s0 + $0x48] sm:$0xff]
  %v25 = vld [vmem:[%s0 + $0x50] sm:$0xff]
  %v26 = vld [vmem:[%s0 + $0x58] sm:$0xff]
  %v27 = vld [vmem:[%s0 + $0x60] sm:$0xff]
  %v28 = vld [vmem:[%s0 + $0x68] sm:$0xff]
  %v29 = vld [vmem:[%s0 + $0x70] sm:$0xff]
  %v30 = vld [vmem:[%s0 + $0x78] sm:$0xff]
  %v31 = vld [vmem:[%s0 + $0x80] sm:$0xff]
  %v32 = vld [vmem:[%s0 + $0x88] sm:$0xff]
  %v33 = vld [vmem:[%s0 + $0x90] sm:$0xff]
  %v34 = vld [vmem:[%s0 + $0x98] sm:$0xff]
  %v35 = vld [vmem:[%s0 + $0xa0] sm:$0xff]
  %v36 = vld [vmem:[%s0 + $0xa8] sm:$0xff]
  %v37 = vld [vmem:[%s0 + $0xb0] sm:$0xff]
  %v38 = vld [vmem:[%s0 + $0xb8] sm:$0xff]
  %v39 = vld [vmem:[%s0 + $0xc0] sm:$0xff]
  %v40 = vld [vmem:[%s0 + $0xc8] sm:$0xff]
  %v41 = vld [vmem:[%s0 + $0xd0] sm:$0xff]
  %v42 = vld [vmem:[%s0 + $0xd8] sm:$0xff]
  %v43 = vld [vmem:[%s0 + $0xe0] sm:$0xff]
  %v44 = vld [vmem:[%s0 + $0xe8] sm:$0xff]
  %v45 = vld [vmem:[%s0 + $0xf0] sm:$0xff]
  %v46 = vld [vmem:[%s0 + $0xf8] sm:$0xff]
  %v47 = vld [vmem:[%s0 + $0x100] sm:$0xff]
  %v48 = vld [vmem:[%s0 + $0x108] sm:$0xff]
  %v49 = vlaneseq
  %v50 = vshrl.u32 %v49, 7
  %v51 = vsub.s32 0, %v50
  %v52 = vrot.slane %v14, %v51
  %vm53 = vcmask 162816
  %v55 = vsel %vm53, %v15, 0
  %v58 = vsel %vm53, %v16, 0
  %v61 = vsel %vm53, %v17, 0
  %v64 = vsel %vm53, %v18, 0
  %v67 = vsel %vm53, %v19, 0
  %v70 = vsel %vm53, %v20, 0
  %v73 = vsel %vm53, %v21, 0
  %v76 = vsel %vm53, %v22, 0
  %v79 = vsel %vm53, %v23, 0
  %v82 = vsel %vm53, %v24, 0
  %v85 = vsel %vm53, %v25, 0
  %v88 = vsel %vm53, %v26, 0
  %v91 = vsel %vm53, %v27, 0
  %v94 = vsel %vm53, %v28, 0
  %v97 = vsel %vm53, %v29, 0
  %v100 = vsel %vm53, %v30, 0
  %v103 = vsel %vm53, %v31, 0
  %v106 = vsel %vm53, %v32, 0
  %v109 = vsel %vm53, %v33, 0
  %v112 = vsel %vm53, %v34, 0
  %v115 = vsel %vm53, %v35, 0
  %v118 = vsel %vm53, %v36, 0
  %v121 = vsel %vm53, %v37, 0
  %v124 = vsel %vm53, %v38, 0
  %v127 = vsel %vm53, %v39, 0
  %v130 = vsel %vm53, %v40, 0
  %v133 = vsel %vm53, %v41, 0
  %v136 = vsel %vm53, %v42, 0
  %v139 = vsel %vm53, %v43, 0
  %v142 = vsel %vm53, %v44, 0
  %v145 = vsel %vm53, %v45, 0
  %v148 = vsel %vm53, %v46, 0
  %v151 = vsel %vm53, %v47, 0
  %v154 = vsel %vm53, %v48, 0
  %vm156 = vcmask 1043456
  %v158 = vsel %vm156, %v13, 0
  %160 = vmatprep.subr.mxu0 0.0
  %161 = vmatpush1.msra.mxu0 0.0
  %162 = vmatprep.subr.mxu0 0.0
  %163 = vmatpush1.msra.mxu0 0.0
  %164 = vmatprep.subr.mxu0 0.0
  %165 = vmatpush1.msra.mxu0 0.0
  %166 = vmatprep.subr.mxu0 0.0
  %167 = vmatpush1.msra.mxu0 0.0
  %168 = vmatprep.subr.mxu0 0.0
  %169 = vmatpush1.msra.mxu0 0.0
  %170 = vmatprep.subr.mxu0 0.0
  %171 = vmatpush1.msra.mxu0 0.0
  %172 = vmatprep.subr.mxu0 0.0
  %173 = vmatpush1.msra.mxu0 0.0
  %174 = vmatprep.subr.mxu0 0.0
  %175 = vmatpush1.msra.mxu0 0.0
  %176 = vmatprep.subr.mxu0 0.0
  %177 = vmatpush1.msra.mxu0 0.0
  %178 = vmatprep.subr.mxu0 0.0
  %179 = vmatpush1.msra.mxu0 0.0
  %180 = vmatprep.subr.mxu0 0.0
  %181 = vmatpush1.msra.mxu0 0.0
  %182 = vmatprep.subr.mxu0 0.0
  %183 = vmatpush1.msra.mxu0 0.0
  %184 = vmatprep.subr.mxu0 0.0
  %185 = vmatpush1.msra.mxu0 0.0
  %186 = vmatprep.subr.mxu0 0.0
  %187 = vmatpush1.msra.mxu0 %v158
  %188 = vmatprep.subr.mxu0 0.0
  %189 = vmatpush1.msra.mxu0 %v12
  %190 = vmatprep.subr.mxu0 0.0
  %191 = vmatpush1.msra.mxu0 %v11
  %192 = vmatprep.subr.mxu0 0.0
  %193 = vmatpush2.msra.mxu0 0.0
  %194 = vmatprep.subr.mxu0 0.0
  %195 = vmatpush2.msra.mxu0 0.0
  %196 = vmatprep.subr.mxu0 0.0
  %197 = vmatpush2.msra.mxu0 0.0
  %198 = vmatprep.subr.mxu0 0.0
  %199 = vmatpush2.msra.mxu0 0.0
  %200 = vmatprep.subr.mxu0 0.0
  %201 = vmatpush2.msra.mxu0 0.0
  %202 = vmatprep.subr.mxu0 0.0
  %203 = vmatpush2.msra.mxu0 0.0
  %204 = vmatprep.subr.mxu0 0.0
  %205 = vmatpush2.msra.mxu0 0.0
  %206 = vmatprep.subr.mxu0 0.0
  %207 = vmatpush2.msra.mxu0 0.0
  %208 = vmatprep.subr.mxu0 0.0
  %209 = vmatpush2.msra.mxu0 0.0
  %210 = vmatprep.subr.mxu0 0.0
  %211 = vmatpush2.msra.mxu0 0.0
  %212 = vmatprep.subr.mxu0 0.0
  %213 = vmatpush2.msra.mxu0 0.0
  %214 = vmatprep.subr.mxu0 0.0
  %215 = vmatpush2.msra.mxu0 0.0
  %216 = vmatprep.subr.mxu0 0.0
  %217 = vmatpush2.msra.mxu0 0.0
  %218 = vmatprep.subr.mxu0 0.0
  %219 = vmatpush2.msra.mxu0 0.0
  %220 = vmatprep.subr.mxu0 0.0
  %221 = vmatpush2.msra.mxu0 0.0
  %222 = vmatprep.subr.mxu0 0.0
  %223 = vmatpush2.msra.mxu0 0.0
  %224 = vmatprep.mubr.f32.mxu0 0.0
  %225 = vmatmul.mubr.f32.gmra.mxu0 %v55
  %v226 = vpop.f32.mrf.mxu0
  %v227 = vadd.f32 %v52, %v226
  %v228 = vpop.f32.mrf.mxu0
  %229 = vmatprep.mubr.f32.mxu0 0.0
  %230 = vmatmul.mubr.f32.gmra.mxu0 %v58
  %v231 = vpop.f32.mrf.mxu0
  %v232 = vadd.f32 %v52, %v231
  %v233 = vpop.f32.mrf.mxu0
  %234 = vmatprep.mubr.f32.mxu0 0.0
  %235 = vmatmul.mubr.f32.gmra.mxu0 %v61
  %v236 = vpop.f32.mrf.mxu0
  %v237 = vadd.f32 %v52, %v236
  %v238 = vpop.f32.mrf.mxu0
  %239 = vmatprep.mubr.f32.mxu0 0.0
  %240 = vmatmul.mubr.f32.gmra.mxu0 %v64
  %v241 = vpop.f32.mrf.mxu0
  %v242 = vadd.f32 %v52, %v241
  %v243 = vpop.f32.mrf.mxu0
  %244 = vmatprep.mubr.f32.mxu0 0.0
  %245 = vmatmul.mubr.f32.gmra.mxu0 %v67
  %v246 = vpop.f32.mrf.mxu0
  %v247 = vadd.f32 %v52, %v246
  %v248 = vpop.f32.mrf.mxu0
  %249 = vmatprep.mubr.f32.mxu0 0.0
  %250 = vmatmul.mubr.f32.gmra.mxu0 %v70
  %v251 = vpop.f32.mrf.mxu0
  %v252 = vadd.f32 %v52, %v251
  %v253 = vpop.f32.mrf.mxu0
  %254 = vmatprep.mubr.f32.mxu0 0.0
  %255 = vmatmul.mubr.f32.gmra.mxu0 %v73
  %v256 = vpop.f32.mrf.mxu0
  %v257 = vadd.f32 %v52, %v256
  %v258 = vpop.f32.mrf.mxu0
  %259 = vmatprep.mubr.f32.mxu0 0.0
  %260 = vmatmul.mubr.f32.gmra.mxu0 %v76
  %v261 = vpop.f32.mrf.mxu0
  %v262 = vadd.f32 %v52, %v261
  %v263 = vpop.f32.mrf.mxu0
  %264 = vmatprep.mubr.f32.mxu0 0.0
  %265 = vmatmul.mubr.f32.gmra.mxu0 %v79
  %v266 = vpop.f32.mrf.mxu0
  %v267 = vadd.f32 %v52, %v266
  %v268 = vpop.f32.mrf.mxu0
  %269 = vmatprep.mubr.f32.mxu0 0.0
  %270 = vmatmul.mubr.f32.gmra.mxu0 %v82
  %v271 = vpop.f32.mrf.mxu0
  %v272 = vadd.f32 %v52, %v271
  %v273 = vpop.f32.mrf.mxu0
  %274 = vmatprep.mubr.f32.mxu0 0.0
  %275 = vmatmul.mubr.f32.gmra.mxu0 %v85
  %v276 = vpop.f32.mrf.mxu0
  %v277 = vadd.f32 %v52, %v276
  %v278 = vpop.f32.mrf.mxu0
  %279 = vmatprep.mubr.f32.mxu0 0.0
  %280 = vmatmul.mubr.f32.gmra.mxu0 %v88
  %v281 = vpop.f32.mrf.mxu0
  %v282 = vadd.f32 %v52, %v281
  %v283 = vpop.f32.mrf.mxu0
  %284 = vmatprep.mubr.f32.mxu0 0.0
  %285 = vmatmul.mubr.f32.gmra.mxu0 %v91
  %v286 = vpop.f32.mrf.mxu0
  %v287 = vadd.f32 %v52, %v286
  %v288 = vpop.f32.mrf.mxu0
  %289 = vmatprep.mubr.f32.mxu0 0.0
  %290 = vmatmul.mubr.f32.gmra.mxu0 %v94
  %v291 = vpop.f32.mrf.mxu0
  %v292 = vadd.f32 %v52, %v291
  %v293 = vpop.f32.mrf.mxu0
  %294 = vmatprep.mubr.f32.mxu0 0.0
  %295 = vmatmul.mubr.f32.gmra.mxu0 %v97
  %v296 = vpop.f32.mrf.mxu0
  %v297 = vadd.f32 %v52, %v296
  %v298 = vpop.f32.mrf.mxu0
  %299 = vmatprep.mubr.f32.mxu0 0.0
  %300 = vmatmul.mubr.f32.gmra.mxu0 %v100
  %v301 = vpop.f32.mrf.mxu0
  %v302 = vadd.f32 %v52, %v301
  %v303 = vpop.f32.mrf.mxu0
  %304 = vmatprep.mubr.f32.mxu0 0.0
  %305 = vmatmul.mubr.f32.gmra.mxu0 %v103
  %v306 = vpop.f32.mrf.mxu0
  %v307 = vadd.f32 %v52, %v306
  %v308 = vpop.f32.mrf.mxu0
  %309 = vmatprep.mubr.f32.mxu0 0.0
  %310 = vmatmul.mubr.f32.gmra.mxu0 %v106
  %v311 = vpop.f32.mrf.mxu0
  %v312 = vadd.f32 %v52, %v311
  %v313 = vpop.f32.mrf.mxu0
  %314 = vmatprep.mubr.f32.mxu0 0.0
  %315 = vmatmul.mubr.f32.gmra.mxu0 %v109
  %v316 = vpop.f32.mrf.mxu0
  %v317 = vadd.f32 %v52, %v316
  %v318 = vpop.f32.mrf.mxu0
  %319 = vmatprep.mubr.f32.mxu0 0.0
  %320 = vmatmul.mubr.f32.gmra.mxu0 %v112
  %v321 = vpop.f32.mrf.mxu0
  %v322 = vadd.f32 %v52, %v321
  %v323 = vpop.f32.mrf.mxu0
  %324 = vmatprep.mubr.f32.mxu0 0.0
  %325 = vmatmul.mubr.f32.gmra.mxu0 %v115
  %v326 = vpop.f32.mrf.mxu0
  %v327 = vadd.f32 %v52, %v326
  %v328 = vpop.f32.mrf.mxu0
  %329 = vmatprep.mubr.f32.mxu0 0.0
  %330 = vmatmul.mubr.f32.gmra.mxu0 %v118
  %v331 = vpop.f32.mrf.mxu0
  %v332 = vadd.f32 %v52, %v331
  %v333 = vpop.f32.mrf.mxu0
  %334 = vmatprep.mubr.f32.mxu0 0.0
  %335 = vmatmul.mubr.f32.gmra.mxu0 %v121
  %v336 = vpop.f32.mrf.mxu0
  %v337 = vadd.f32 %v52, %v336
  %v338 = vpop.f32.mrf.mxu0
  %339 = vmatprep.mubr.f32.mxu0 0.0
  %340 = vmatmul.mubr.f32.gmra.mxu0 %v124
  %v341 = vpop.f32.mrf.mxu0
  %v342 = vadd.f32 %v52, %v341
  %v343 = vpop.f32.mrf.mxu0
  %344 = vmatprep.mubr.f32.mxu0 0.0
  %345 = vmatmul.mubr.f32.gmra.mxu0 %v127
  %v346 = vpop.f32.mrf.mxu0
  %v347 = vadd.f32 %v52, %v346
  %v348 = vpop.f32.mrf.mxu0
  %349 = vmatprep.mubr.f32.mxu0 0.0
  %350 = vmatmul.mubr.f32.gmra.mxu0 %v130
  %v351 = vpop.f32.mrf.mxu0
  %v352 = vadd.f32 %v52, %v351
  %v353 = vpop.f32.mrf.mxu0
  %354 = vmatprep.mubr.f32.mxu0 0.0
  %355 = vmatmul.mubr.f32.gmra.mxu0 %v133
  %v356 = vpop.f32.mrf.mxu0
  %v357 = vadd.f32 %v52, %v356
  %v358 = vpop.f32.mrf.mxu0
  %359 = vmatprep.mubr.f32.mxu0 0.0
  %360 = vmatmul.mubr.f32.gmra.mxu0 %v136
  %v361 = vpop.f32.mrf.mxu0
  %v362 = vadd.f32 %v52, %v361
  %v363 = vpop.f32.mrf.mxu0
  %364 = vmatprep.mubr.f32.mxu0 0.0
  %365 = vmatmul.mubr.f32.gmra.mxu0 %v139
  %v366 = vpop.f32.mrf.mxu0
  %v367 = vadd.f32 %v52, %v366
  %v368 = vpop.f32.mrf.mxu0
  %369 = vmatprep.mubr.f32.mxu0 0.0
  %370 = vmatmul.mubr.f32.gmra.mxu0 %v142
  %v371 = vpop.f32.mrf.mxu0
  %v372 = vadd.f32 %v52, %v371
  %v373 = vpop.f32.mrf.mxu0
  %374 = vmatprep.mubr.f32.mxu0 0.0
  %375 = vmatmul.mubr.f32.gmra.mxu0 %v145
  %v376 = vpop.f32.mrf.mxu0
  %v377 = vadd.f32 %v52, %v376
  %v378 = vpop.f32.mrf.mxu0
  %379 = vmatprep.mubr.f32.mxu0 0.0
  %380 = vmatmul.mubr.f32.gmra.mxu0 %v148
  %v381 = vpop.f32.mrf.mxu0
  %v382 = vadd.f32 %v52, %v381
  %v383 = vpop.f32.mrf.mxu0
  %384 = vmatprep.mubr.f32.mxu0 0.0
  %385 = vmatmul.mubr.f32.gmra.mxu0 %v151
  %v386 = vpop.f32.mrf.mxu0
  %v387 = vadd.f32 %v52, %v386
  %v388 = vpop.f32.mrf.mxu0
  %389 = vmatprep.mubr.f32.mxu0 0.0
  %390 = vmatmul.mubr.f32.gmra.mxu0 %v154
  %v391 = vpop.f32.mrf.mxu0
  %v392 = vadd.f32 %v52, %v391
  %v393 = vpop.f32.mrf.mxu0
  %394 = vdwg.mxu0
  %v395 = vmax.f32 %v227, 0.0
  %v396 = vmax.f32 %v232, 0.0
  %v397 = vmax.f32 %v237, 0.0
  %v398 = vmax.f32 %v242, 0.0
  %v399 = vmax.f32 %v247, 0.0
  %v400 = vmax.f32 %v252, 0.0
  %v401 = vmax.f32 %v257, 0.0
  %v402 = vmax.f32 %v262, 0.0
  %v403 = vmax.f32 %v267, 0.0
  %v404 = vmax.f32 %v272, 0.0
  %v405 = vmax.f32 %v277, 0.0
  %v406 = vmax.f32 %v282, 0.0
  %v407 = vmax.f32 %v287, 0.0
  %v408 = vmax.f32 %v292, 0.0
  %v409 = vmax.f32 %v297, 0.0
  %v410 = vmax.f32 %v302, 0.0
  %v411 = vmax.f32 %v307, 0.0
  %v412 = vmax.f32 %v312, 0.0
  %v413 = vmax.f32 %v317, 0.0
  %v414 = vmax.f32 %v322, 0.0
  %v415 = vmax.f32 %v327, 0.0
  %v416 = vmax.f32 %v332, 0.0
  %v417 = vmax.f32 %v337, 0.0
  %v418 = vmax.f32 %v342, 0.0
  %v419 = vmax.f32 %v347, 0.0
  %v420 = vmax.f32 %v352, 0.0
  %v421 = vmax.f32 %v357, 0.0
  %v422 = vmax.f32 %v362, 0.0
  %v423 = vmax.f32 %v367, 0.0
  %v424 = vmax.f32 %v372, 0.0
  %v425 = vmax.f32 %v377, 0.0
  %v426 = vmax.f32 %v382, 0.0
  %v427 = vmax.f32 %v387, 0.0
  %v428 = vmax.f32 %v392, 0.0
  %vm429 = vcmask 130048
  %430 = vst.msk [vmem:[#allocation2] sm:$0xff] %vm429, %v395
  %431 = vst.msk [vmem:[#allocation2 + $0x8] sm:$0xff] %vm429, %v396
  %432 = vst.msk [vmem:[#allocation2 + $0x10] sm:$0xff] %vm429, %v397
  %433 = vst.msk [vmem:[#allocation2 + $0x18] sm:$0xff] %vm429, %v398
  %434 = vst.msk [vmem:[#allocation2 + $0x20] sm:$0xff] %vm429, %v399
  %435 = vst.msk [vmem:[#allocation2 + $0x28] sm:$0xff] %vm429, %v400
  %436 = vst.msk [vmem:[#allocation2 + $0x30] sm:$0xff] %vm429, %v401
  %437 = vst.msk [vmem:[#allocation2 + $0x38] sm:$0xff] %vm429, %v402
  %438 = vst.msk [vmem:[#allocation2 + $0x40] sm:$0xff] %vm429, %v403
  %439 = vst.msk [vmem:[#allocation2 + $0x48] sm:$0xff] %vm429, %v404
  %440 = vst.msk [vmem:[#allocation2 + $0x50] sm:$0xff] %vm429, %v405
  %441 = vst.msk [vmem:[#allocation2 + $0x58] sm:$0xff] %vm429, %v406
  %442 = vst.msk [vmem:[#allocation2 + $0x60] sm:$0xff] %vm429, %v407
  %443 = vst.msk [vmem:[#allocation2 + $0x68] sm:$0xff] %vm429, %v408
  %444 = vst.msk [vmem:[#allocation2 + $0x70] sm:$0xff] %vm429, %v409
  %445 = vst.msk [vmem:[#allocation2 + $0x78] sm:$0xff] %vm429, %v410
  %446 = vst.msk [vmem:[#allocation2 + $0x80] sm:$0xff] %vm429, %v411
  %447 = vst.msk [vmem:[#allocation2 + $0x88] sm:$0xff] %vm429, %v412
  %448 = vst.msk [vmem:[#allocation2 + $0x90] sm:$0xff] %vm429, %v413
  %449 = vst.msk [vmem:[#allocation2 + $0x98] sm:$0xff] %vm429, %v414
  %450 = vst.msk [vmem:[#allocation2 + $0xa0] sm:$0xff] %vm429, %v415
  %451 = vst.msk [vmem:[#allocation2 + $0xa8] sm:$0xff] %vm429, %v416
  %452 = vst.msk [vmem:[#allocation2 + $0xb0] sm:$0xff] %vm429, %v417
  %453 = vst.msk [vmem:[#allocation2 + $0xb8] sm:$0xff] %vm429, %v418
  %454 = vst.msk [vmem:[#allocation2 + $0xc0] sm:$0xff] %vm429, %v419
  %455 = vst.msk [vmem:[#allocation2 + $0xc8] sm:$0xff] %vm429, %v420
  %456 = vst.msk [vmem:[#allocation2 + $0xd0] sm:$0xff] %vm429, %v421
  %457 = vst.msk [vmem:[#allocation2 + $0xd8] sm:$0xff] %vm429, %v422
  %458 = vst.msk [vmem:[#allocation2 + $0xe0] sm:$0xff] %vm429, %v423
  %459 = vst.msk [vmem:[#allocation2 + $0xe8] sm:$0xff] %vm429, %v424
  %460 = vst.msk [vmem:[#allocation2 + $0xf0] sm:$0xff] %vm429, %v425
  %461 = vst.msk [vmem:[#allocation2 + $0xf8] sm:$0xff] %vm429, %v426
  %462 = vst.msk [vmem:[#allocation2 + $0x100] sm:$0xff] %vm429, %v427
  %463 = vst.msk [vmem:[#allocation2 + $0x108] sm:$0xff] %vm429, %v428
  %v464 = vld [vmem:[%s1 + $0x20] sm:$0xff]
  %v465 = vld [vmem:[%s1 + $0x28] sm:$0xff]
  %v466 = vld [vmem:[%s1 + $0x30] sm:$0xff]
  %v467 = vld [vmem:[%s1 + $0x38] sm:$0xff]
  %v468 = vld [vmem:[%s1 + $0x40] sm:$0x1]
  %v469 = vld [vmem:[#allocation2] sm:$0xff]
  %v470 = vld [vmem:[#allocation2 + $0x8] sm:$0xff]
  %v471 = vld [vmem:[#allocation2 + $0x10] sm:$0xff]
  %v472 = vld [vmem:[#allocation2 + $0x18] sm:$0xff]
  %v473 = vld [vmem:[#allocation2 + $0x20] sm:$0xff]
  %v474 = vld [vmem:[#allocation2 + $0x28] sm:$0xff]
  %v475 = vld [vmem:[#allocation2 + $0x30] sm:$0xff]
  %v476 = vld [vmem:[#allocation2 + $0x38] sm:$0xff]
  %v477 = vld [vmem:[#allocation2 + $0x40] sm:$0xff]
  %v478 = vld [vmem:[#allocation2 + $0x48] sm:$0xff]
  %v479 = vld [vmem:[#allocation2 + $0x50] sm:$0xff]
  %v480 = vld [vmem:[#allocation2 + $0x58] sm:$0xff]
  %v481 = vld [vmem:[#allocation2 + $0x60] sm:$0xff]
  %v482 = vld [vmem:[#allocation2 + $0x68] sm:$0xff]
  %v483 = vld [vmem:[#allocation2 + $0x70] sm:$0xff]
  %v484 = vld [vmem:[#allocation2 + $0x78] sm:$0xff]
  %v485 = vld [vmem:[#allocation2 + $0x80] sm:$0xff]
  %v486 = vld [vmem:[#allocation2 + $0x88] sm:$0xff]
  %v487 = vld [vmem:[#allocation2 + $0x90] sm:$0xff]
  %v488 = vld [vmem:[#allocation2 + $0x98] sm:$0xff]
  %v489 = vld [vmem:[#allocation2 + $0xa0] sm:$0xff]
  %v490 = vld [vmem:[#allocation2 + $0xa8] sm:$0xff]
  %v491 = vld [vmem:[#allocation2 + $0xb0] sm:$0xff]
  %v492 = vld [vmem:[#allocation2 + $0xb8] sm:$0xff]
  %v493 = vld [vmem:[#allocation2 + $0xc0] sm:$0xff]
  %v494 = vld [vmem:[#allocation2 + $0xc8] sm:$0xff]
  %v495 = vld [vmem:[#allocation2 + $0xd0] sm:$0xff]
  %v496 = vld [vmem:[#allocation2 + $0xd8] sm:$0xff]
  %v497 = vld [vmem:[#allocation2 + $0xe0] sm:$0xff]
  %v498 = vld [vmem:[#allocation2 + $0xe8] sm:$0xff]
  %v499 = vld [vmem:[#allocation2 + $0xf0] sm:$0xff]
  %v500 = vld [vmem:[#allocation2 + $0xf8] sm:$0xff]
  %v501 = vld [vmem:[#allocation2 + $0x100] sm:$0xf]
  %v502 = vld [vmem:[#allocation2 + $0xc] sm:$0xff]
  %v503 = vld [vmem:[#allocation2 + $0x14] sm:$0xff]
  %v504 = vld [vmem:[#allocation2 + $0x1c] sm:$0xff]
  %v505 = vld [vmem:[#allocation2 + $0x24] sm:$0xff]
  %v506 = vld [vmem:[#allocation2 + $0x2c] sm:$0xff]
  %v507 = vld [vmem:[#allocation2 + $0x34] sm:$0xff]
  %v508 = vld [vmem:[#allocation2 + $0x3c] sm:$0xff]
  %v509 = vld [vmem:[#allocation2 + $0x44] sm:$0xff]
  %v510 = vld [vmem:[#allocation2 + $0x4c] sm:$0xff]
  %v511 = vld [vmem:[#allocation2 + $0x54] sm:$0xff]
  %v512 = vld [vmem:[#allocation2 + $0x5c] sm:$0xff]
  %v513 = vld [vmem:[#allocation2 + $0x64] sm:$0xff]
  %v514 = vld [vmem:[#allocation2 + $0x6c] sm:$0xff]
  %v515 = vld [vmem:[#allocation2 + $0x74] sm:$0xff]
  %v516 = vld [vmem:[#allocation2 + $0x7c] sm:$0xff]
  %v517 = vld [vmem:[#allocation2 + $0x84] sm:$0xff]
  %v518 = vld [vmem:[#allocation2 + $0x8c] sm:$0xff]
  %v519 = vld [vmem:[#allocation2 + $0x94] sm:$0xff]
  %v520 = vld [vmem:[#allocation2 + $0x9c] sm:$0xff]
  %v521 = vld [vmem:[#allocation2 + $0xa4] sm:$0xff]
  %v522 = vld [vmem:[#allocation2 + $0xac] sm:$0xff]
  %v523 = vld [vmem:[#allocation2 + $0xb4] sm:$0xff]
  %v524 = vld [vmem:[#allocation2 + $0xbc] sm:$0xff]
  %v525 = vld [vmem:[#allocation2 + $0xc4] sm:$0xff]
  %v526 = vld [vmem:[#allocation2 + $0xcc] sm:$0xff]
  %v527 = vld [vmem:[#allocation2 + $0xd4] sm:$0xff]
  %v528 = vld [vmem:[#allocation2 + $0xdc] sm:$0xff]
  %v529 = vld [vmem:[#allocation2 + $0xe4] sm:$0xff]
  %v530 = vld [vmem:[#allocation2 + $0xec] sm:$0xff]
  %v531 = vld [vmem:[#allocation2 + $0xf4] sm:$0xff]
  %v532 = vld [vmem:[#allocation2 + $0xfc] sm:$0xff]
  %v533 = vld [vmem:[#allocation2 + $0x104] sm:$0xff]
  %v534 = vld [vmem:[#allocation2 + $0x10c] sm:$0xf]
  %v536 = vsel %vm429, %v502, 0
  %v539 = vsel %vm429, %v503, 0
  %v542 = vsel %vm429, %v504, 0
  %v545 = vsel %vm429, %v505, 0
  %v548 = vsel %vm429, %v506, 0
  %v551 = vsel %vm429, %v507, 0
  %v554 = vsel %vm429, %v508, 0
  %v557 = vsel %vm429, %v509, 0
  %v560 = vsel %vm429, %v510, 0
  %v563 = vsel %vm429, %v511, 0
  %v566 = vsel %vm429, %v512, 0
  %v569 = vsel %vm429, %v513, 0
  %v572 = vsel %vm429, %v514, 0
  %v575 = vsel %vm429, %v515, 0
  %v578 = vsel %vm429, %v516, 0
  %v581 = vsel %vm429, %v517, 0
  %v584 = vsel %vm429, %v518, 0
  %v587 = vsel %vm429, %v519, 0
  %v590 = vsel %vm429, %v520, 0
  %v593 = vsel %vm429, %v521, 0
  %v596 = vsel %vm429, %v522, 0
  %v599 = vsel %vm429, %v523, 0
  %v602 = vsel %vm429, %v524, 0
  %v605 = vsel %vm429, %v525, 0
  %v608 = vsel %vm429, %v526, 0
  %v611 = vsel %vm429, %v527, 0
  %v614 = vsel %vm429, %v528, 0
  %v617 = vsel %vm429, %v529, 0
  %v620 = vsel %vm429, %v530, 0
  %v623 = vsel %vm429, %v531, 0
  %v626 = vsel %vm429, %v532, 0
  %v629 = vsel %vm429, %v533, 0
  %v632 = vsel %vm429, %v534, 0
  %634 = vmatprep.subr.mxu0 0.0
  %635 = vmatpush1.msra.mxu0 0.0
  %636 = vmatprep.subr.mxu0 0.0
  %637 = vmatpush1.msra.mxu0 0.0
  %638 = vmatprep.subr.mxu0 0.0
  %639 = vmatpush1.msra.mxu0 0.0
  %640 = vmatprep.subr.mxu0 0.0
  %641 = vmatpush1.msra.mxu0 0.0
  %642 = vmatprep.subr.mxu0 0.0
  %643 = vmatpush1.msra.mxu0 0.0
  %644 = vmatprep.subr.mxu0 0.0
  %645 = vmatpush1.msra.mxu0 0.0
  %646 = vmatprep.subr.mxu0 0.0
  %647 = vmatpush1.msra.mxu0 0.0
  %648 = vmatprep.subr.mxu0 0.0
  %649 = vmatpush1.msra.mxu0 0.0
  %650 = vmatprep.subr.mxu0 0.0
  %651 = vmatpush1.msra.mxu0 0.0
  %652 = vmatprep.subr.mxu0 0.0
  %653 = vmatpush1.msra.mxu0 0.0
  %654 = vmatprep.subr.mxu0 0.0
  %655 = vmatpush1.msra.mxu0 0.0
  %656 = vmatprep.subr.mxu0 0.0
  %657 = vmatpush1.msra.mxu0 0.0
  %658 = vmatprep.subr.mxu0 0.0
  %659 = vmatpush1.msra.mxu0 0.0
  %660 = vmatprep.subr.mxu0 0.0
  %661 = vmatpush1.msra.mxu0 0.0
  %662 = vmatprep.subr.mxu0 0.0
  %663 = vmatpush1.msra.mxu0 %v467
  %664 = vmatprep.subr.mxu0 0.0
  %665 = vmatpush1.msra.mxu0 %v466
  %666 = vmatprep.subr.mxu0 0.0
  %667 = vmatpush2.msra.mxu0 0.0
  %668 = vmatprep.subr.mxu0 0.0
  %669 = vmatpush2.msra.mxu0 0.0
  %670 = vmatprep.subr.mxu0 0.0
  %671 = vmatpush2.msra.mxu0 0.0
  %672 = vmatprep.subr.mxu0 0.0
  %673 = vmatpush2.msra.mxu0 0.0
  %674 = vmatprep.subr.mxu0 0.0
  %675 = vmatpush2.msra.mxu0 0.0
  %676 = vmatprep.subr.mxu0 0.0
  %677 = vmatpush2.msra.mxu0 0.0
  %678 = vmatprep.subr.mxu0 0.0
  %679 = vmatpush2.msra.mxu0 0.0
  %680 = vmatprep.subr.mxu0 0.0
  %681 = vmatpush2.msra.mxu0 0.0
  %682 = vmatprep.subr.mxu0 0.0
  %683 = vmatpush2.msra.mxu0 0.0
  %684 = vmatprep.subr.mxu0 0.0
  %685 = vmatpush2.msra.mxu0 0.0
  %686 = vmatprep.subr.mxu0 0.0
  %687 = vmatpush2.msra.mxu0 0.0
  %688 = vmatprep.subr.mxu0 0.0
  %689 = vmatpush2.msra.mxu0 0.0
  %690 = vmatprep.subr.mxu0 0.0
  %691 = vmatpush2.msra.mxu0 0.0
  %692 = vmatprep.subr.mxu0 0.0
  %693 = vmatpush2.msra.mxu0 0.0
  %694 = vmatprep.subr.mxu0 0.0
  %695 = vmatpush2.msra.mxu0 0.0
  %696 = vmatprep.subr.mxu0 0.0
  %697 = vmatpush2.msra.mxu0 0.0
  %698 = vmatprep.mubr.f32.mxu0 0.0
  %699 = vmatmul.mubr.f32.gmra.mxu0 %v536
  %v700 = vpop.f32.mrf.mxu0
  %v701 = vadd.f32 0.0, %v700
  %v702 = vpop.f32.mrf.mxu0
  %703 = vmatprep.mubr.f32.mxu0 0.0
  %704 = vmatmul.mubr.f32.gmra.mxu0 %v539
  %v705 = vpop.f32.mrf.mxu0
  %v706 = vadd.f32 0.0, %v705
  %v707 = vpop.f32.mrf.mxu0
  %708 = vmatprep.mubr.f32.mxu0 0.0
  %709 = vmatmul.mubr.f32.gmra.mxu0 %v542
  %v710 = vpop.f32.mrf.mxu0
  %v711 = vadd.f32 0.0, %v710
  %v712 = vpop.f32.mrf.mxu0
  %713 = vmatprep.mubr.f32.mxu0 0.0
  %714 = vmatmul.mubr.f32.gmra.mxu0 %v545
  %v715 = vpop.f32.mrf.mxu0
  %v716 = vadd.f32 0.0, %v715
  %v717 = vpop.f32.mrf.mxu0
  %718 = vmatprep.mubr.f32.mxu0 0.0
  %719 = vmatmul.mubr.f32.gmra.mxu0 %v548
  %v720 = vpop.f32.mrf.mxu0
  %v721 = vadd.f32 0.0, %v720
  %v722 = vpop.f32.mrf.mxu0
  %723 = vmatprep.mubr.f32.mxu0 0.0
  %724 = vmatmul.mubr.f32.gmra.mxu0 %v551
  %v725 = vpop.f32.mrf.mxu0
  %v726 = vadd.f32 0.0, %v725
  %v727 = vpop.f32.mrf.mxu0
  %728 = vmatprep.mubr.f32.mxu0 0.0
  %729 = vmatmul.mubr.f32.gmra.mxu0 %v554
  %v730 = vpop.f32.mrf.mxu0
  %v731 = vadd.f32 0.0, %v730
  %v732 = vpop.f32.mrf.mxu0
  %733 = vmatprep.mubr.f32.mxu0 0.0
  %734 = vmatmul.mubr.f32.gmra.mxu0 %v557
  %v735 = vpop.f32.mrf.mxu0
  %v736 = vadd.f32 0.0, %v735
  %v737 = vpop.f32.mrf.mxu0
  %738 = vmatprep.mubr.f32.mxu0 0.0
  %739 = vmatmul.mubr.f32.gmra.mxu0 %v560
  %v740 = vpop.f32.mrf.mxu0
  %v741 = vadd.f32 0.0, %v740
  %v742 = vpop.f32.mrf.mxu0
  %743 = vmatprep.mubr.f32.mxu0 0.0
  %744 = vmatmul.mubr.f32.gmra.mxu0 %v563
  %v745 = vpop.f32.mrf.mxu0
  %v746 = vadd.f32 0.0, %v745
  %v747 = vpop.f32.mrf.mxu0
  %748 = vmatprep.mubr.f32.mxu0 0.0
  %749 = vmatmul.mubr.f32.gmra.mxu0 %v566
  %v750 = vpop.f32.mrf.mxu0
  %v751 = vadd.f32 0.0, %v750
  %v752 = vpop.f32.mrf.mxu0
  %753 = vmatprep.mubr.f32.mxu0 0.0
  %754 = vmatmul.mubr.f32.gmra.mxu0 %v569
  %v755 = vpop.f32.mrf.mxu0
  %v756 = vadd.f32 0.0, %v755
  %v757 = vpop.f32.mrf.mxu0
  %758 = vmatprep.mubr.f32.mxu0 0.0
  %759 = vmatmul.mubr.f32.gmra.mxu0 %v572
  %v760 = vpop.f32.mrf.mxu0
  %v761 = vadd.f32 0.0, %v760
  %v762 = vpop.f32.mrf.mxu0
  %763 = vmatprep.mubr.f32.mxu0 0.0
  %764 = vmatmul.mubr.f32.gmra.mxu0 %v575
  %v765 = vpop.f32.mrf.mxu0
  %v766 = vadd.f32 0.0, %v765
  %v767 = vpop.f32.mrf.mxu0
  %768 = vmatprep.mubr.f32.mxu0 0.0
  %769 = vmatmul.mubr.f32.gmra.mxu0 %v578
  %v770 = vpop.f32.mrf.mxu0
  %v771 = vadd.f32 0.0, %v770
  %v772 = vpop.f32.mrf.mxu0
  %773 = vmatprep.mubr.f32.mxu0 0.0
  %774 = vmatmul.mubr.f32.gmra.mxu0 %v581
  %v775 = vpop.f32.mrf.mxu0
  %v776 = vadd.f32 0.0, %v775
  %v777 = vpop.f32.mrf.mxu0
  %778 = vmatprep.mubr.f32.mxu0 0.0
  %779 = vmatmul.mubr.f32.gmra.mxu0 %v584
  %v780 = vpop.f32.mrf.mxu0
  %v781 = vadd.f32 0.0, %v780
  %v782 = vpop.f32.mrf.mxu0
  %783 = vmatprep.mubr.f32.mxu0 0.0
  %784 = vmatmul.mubr.f32.gmra.mxu0 %v587
  %v785 = vpop.f32.mrf.mxu0
  %v786 = vadd.f32 0.0, %v785
  %v787 = vpop.f32.mrf.mxu0
  %788 = vmatprep.mubr.f32.mxu0 0.0
  %789 = vmatmul.mubr.f32.gmra.mxu0 %v590
  %v790 = vpop.f32.mrf.mxu0
  %v791 = vadd.f32 0.0, %v790
  %v792 = vpop.f32.mrf.mxu0
  %793 = vmatprep.mubr.f32.mxu0 0.0
  %794 = vmatmul.mubr.f32.gmra.mxu0 %v593
  %v795 = vpop.f32.mrf.mxu0
  %v796 = vadd.f32 0.0, %v795
  %v797 = vpop.f32.mrf.mxu0
  %798 = vmatprep.mubr.f32.mxu0 0.0
  %799 = vmatmul.mubr.f32.gmra.mxu0 %v596
  %v800 = vpop.f32.mrf.mxu0
  %v801 = vadd.f32 0.0, %v800
  %v802 = vpop.f32.mrf.mxu0
  %803 = vmatprep.mubr.f32.mxu0 0.0
  %804 = vmatmul.mubr.f32.gmra.mxu0 %v599
  %v805 = vpop.f32.mrf.mxu0
  %v806 = vadd.f32 0.0, %v805
  %v807 = vpop.f32.mrf.mxu0
  %808 = vmatprep.mubr.f32.mxu0 0.0
  %809 = vmatmul.mubr.f32.gmra.mxu0 %v602
  %v810 = vpop.f32.mrf.mxu0
  %v811 = vadd.f32 0.0, %v810
  %v812 = vpop.f32.mrf.mxu0
  %813 = vmatprep.mubr.f32.mxu0 0.0
  %814 = vmatmul.mubr.f32.gmra.mxu0 %v605
  %v815 = vpop.f32.mrf.mxu0
  %v816 = vadd.f32 0.0, %v815
  %v817 = vpop.f32.mrf.mxu0
  %818 = vmatprep.mubr.f32.mxu0 0.0
  %819 = vmatmul.mubr.f32.gmra.mxu0 %v608
  %v820 = vpop.f32.mrf.mxu0
  %v821 = vadd.f32 0.0, %v820
  %v822 = vpop.f32.mrf.mxu0
  %823 = vmatprep.mubr.f32.mxu0 0.0
  %824 = vmatmul.mubr.f32.gmra.mxu0 %v611
  %v825 = vpop.f32.mrf.mxu0
  %v826 = vadd.f32 0.0, %v825
  %v827 = vpop.f32.mrf.mxu0
  %828 = vmatprep.mubr.f32.mxu0 0.0
  %829 = vmatmul.mubr.f32.gmra.mxu0 %v614
  %v830 = vpop.f32.mrf.mxu0
  %v831 = vadd.f32 0.0, %v830
  %v832 = vpop.f32.mrf.mxu0
  %833 = vmatprep.mubr.f32.mxu0 0.0
  %834 = vmatmul.mubr.f32.gmra.mxu0 %v617
  %v835 = vpop.f32.mrf.mxu0
  %v836 = vadd.f32 0.0, %v835
  %v837 = vpop.f32.mrf.mxu0
  %838 = vmatprep.mubr.f32.mxu0 0.0
  %839 = vmatmul.mubr.f32.gmra.mxu0 %v620
  %v840 = vpop.f32.mrf.mxu0
  %v841 = vadd.f32 0.0, %v840
  %v842 = vpop.f32.mrf.mxu0
  %843 = vmatprep.mubr.f32.mxu0 0.0
  %844 = vmatmul.mubr.f32.gmra.mxu0 %v623
  %v845 = vpop.f32.mrf.mxu0
  %v846 = vadd.f32 0.0, %v845
  %v847 = vpop.f32.mrf.mxu0
  %848 = vmatprep.mubr.f32.mxu0 0.0
  %849 = vmatmul.mubr.f32.gmra.mxu0 %v626
  %v850 = vpop.f32.mrf.mxu0
  %v851 = vadd.f32 0.0, %v850
  %v852 = vpop.f32.mrf.mxu0
  %853 = vmatprep.mubr.f32.mxu0 0.0
  %854 = vmatmul.mubr.f32.gmra.mxu0 %v629
  %v855 = vpop.f32.mrf.mxu0
  %v856 = vadd.f32 0.0, %v855
  %v857 = vpop.f32.mrf.mxu0
  %858 = vmatprep.mubr.f32.mxu0 0.0
  %859 = vmatmul.mubr.f32.gmra.mxu0 %v632
  %v860 = vpop.f32.mrf.mxu0
  %v861 = vadd.f32 0.0, %v860
  %v862 = vpop.f32.mrf.mxu0
  %863 = vdwg.mxu0
  %v865 = vsel %vm429, %v469, 0
  %v868 = vsel %vm429, %v470, 0
  %v871 = vsel %vm429, %v471, 0
  %v874 = vsel %vm429, %v472, 0
  %v877 = vsel %vm429, %v473, 0
  %v880 = vsel %vm429, %v474, 0
  %v883 = vsel %vm429, %v475, 0
  %v886 = vsel %vm429, %v476, 0
  %v889 = vsel %vm429, %v477, 0
  %v892 = vsel %vm429, %v478, 0
  %v895 = vsel %vm429, %v479, 0
  %v898 = vsel %vm429, %v480, 0
  %v901 = vsel %vm429, %v481, 0
  %v904 = vsel %vm429, %v482, 0
  %v907 = vsel %vm429, %v483, 0
  %v910 = vsel %vm429, %v484, 0
  %v913 = vsel %vm429, %v485, 0
  %v916 = vsel %vm429, %v486, 0
  %v919 = vsel %vm429, %v487, 0
  %v922 = vsel %vm429, %v488, 0
  %v925 = vsel %vm429, %v489, 0
  %v928 = vsel %vm429, %v490, 0
  %v931 = vsel %vm429, %v491, 0
  %v934 = vsel %vm429, %v492, 0
  %v937 = vsel %vm429, %v493, 0
  %v940 = vsel %vm429, %v494, 0
  %v943 = vsel %vm429, %v495, 0
  %v946 = vsel %vm429, %v496, 0
  %v949 = vsel %vm429, %v497, 0
  %v952 = vsel %vm429, %v498, 0
  %v955 = vsel %vm429, %v499, 0
  %v958 = vsel %vm429, %v500, 0
  %v961 = vsel %vm429, %v501, 0
  %963 = vmatprep.subr.mxu0 0.0
  %964 = vmatpush1.msra.mxu0 0.0
  %965 = vmatprep.subr.mxu0 0.0
  %966 = vmatpush1.msra.mxu0 0.0
  %967 = vmatprep.subr.mxu0 0.0
  %968 = vmatpush1.msra.mxu0 0.0
  %969 = vmatprep.subr.mxu0 0.0
  %970 = vmatpush1.msra.mxu0 0.0
  %971 = vmatprep.subr.mxu0 0.0
  %972 = vmatpush1.msra.mxu0 0.0
  %973 = vmatprep.subr.mxu0 0.0
  %974 = vmatpush1.msra.mxu0 0.0
  %975 = vmatprep.subr.mxu0 0.0
  %976 = vmatpush1.msra.mxu0 0.0
  %977 = vmatprep.subr.mxu0 0.0
  %978 = vmatpush1.msra.mxu0 0.0
  %979 = vmatprep.subr.mxu0 0.0
  %980 = vmatpush1.msra.mxu0 0.0
  %981 = vmatprep.subr.mxu0 0.0
  %982 = vmatpush1.msra.mxu0 0.0
  %983 = vmatprep.subr.mxu0 0.0
  %984 = vmatpush1.msra.mxu0 0.0
  %985 = vmatprep.subr.mxu0 0.0
  %986 = vmatpush1.msra.mxu0 0.0
  %987 = vmatprep.subr.mxu0 0.0
  %988 = vmatpush1.msra.mxu0 0.0
  %989 = vmatprep.subr.mxu0 0.0
  %990 = vmatpush1.msra.mxu0 0.0
  %991 = vmatprep.subr.mxu0 0.0
  %992 = vmatpush1.msra.mxu0 %v465
  %993 = vmatprep.subr.mxu0 0.0
  %994 = vmatpush1.msra.mxu0 %v464
  %995 = vmatprep.subr.mxu0 0.0
  %996 = vmatpush2.msra.mxu0 0.0
  %997 = vmatprep.subr.mxu0 0.0
  %998 = vmatpush2.msra.mxu0 0.0
  %999 = vmatprep.subr.mxu0 0.0
  %1000 = vmatpush2.msra.mxu0 0.0
  %1001 = vmatprep.subr.mxu0 0.0
  %1002 = vmatpush2.msra.mxu0 0.0
  %1003 = vmatprep.subr.mxu0 0.0
  %1004 = vmatpush2.msra.mxu0 0.0
  %1005 = vmatprep.subr.mxu0 0.0
  %1006 = vmatpush2.msra.mxu0 0.0
  %1007 = vmatprep.subr.mxu0 0.0
  %1008 = vmatpush2.msra.mxu0 0.0
  %1009 = vmatprep.subr.mxu0 0.0
  %1010 = vmatpush2.msra.mxu0 0.0
  %1011 = vmatprep.subr.mxu0 0.0
  %1012 = vmatpush2.msra.mxu0 0.0
  %1013 = vmatprep.subr.mxu0 0.0
  %1014 = vmatpush2.msra.mxu0 0.0
  %1015 = vmatprep.subr.mxu0 0.0
  %1016 = vmatpush2.msra.mxu0 0.0
  %1017 = vmatprep.subr.mxu0 0.0
  %1018 = vmatpush2.msra.mxu0 0.0
  %1019 = vmatprep.subr.mxu0 0.0
  %1020 = vmatpush2.msra.mxu0 0.0
  %1021 = vmatprep.subr.mxu0 0.0
  %1022 = vmatpush2.msra.mxu0 0.0
  %1023 = vmatprep.subr.mxu0 0.0
  %1024 = vmatpush2.msra.mxu0 0.0
  %1025 = vmatprep.subr.mxu0 0.0
  %1026 = vmatpush2.msra.mxu0 0.0
  %1027 = vmatprep.mubr.f32.mxu0 0.0
  %1028 = vmatmul.mubr.f32.gmra.mxu0 %v865
  %v1029 = vpop.f32.mrf.mxu0
  %v1030 = vadd.f32 %v701, %v1029
  %v1031 = vpop.f32.mrf.mxu0
  %1032 = vmatprep.mubr.f32.mxu0 0.0
  %1033 = vmatmul.mubr.f32.gmra.mxu0 %v868
  %v1034 = vpop.f32.mrf.mxu0
  %v1035 = vadd.f32 %v706, %v1034
  %v1036 = vpop.f32.mrf.mxu0
  %1037 = vmatprep.mubr.f32.mxu0 0.0
  %1038 = vmatmul.mubr.f32.gmra.mxu0 %v871
  %v1039 = vpop.f32.mrf.mxu0
  %v1040 = vadd.f32 %v711, %v1039
  %v1041 = vpop.f32.mrf.mxu0
  %1042 = vmatprep.mubr.f32.mxu0 0.0
  %1043 = vmatmul.mubr.f32.gmra.mxu0 %v874
  %v1044 = vpop.f32.mrf.mxu0
  %v1045 = vadd.f32 %v716, %v1044
  %v1046 = vpop.f32.mrf.mxu0
  %1047 = vmatprep.mubr.f32.mxu0 0.0
  %1048 = vmatmul.mubr.f32.gmra.mxu0 %v877
  %v1049 = vpop.f32.mrf.mxu0
  %v1050 = vadd.f32 %v721, %v1049
  %v1051 = vpop.f32.mrf.mxu0
  %1052 = vmatprep.mubr.f32.mxu0 0.0
  %1053 = vmatmul.mubr.f32.gmra.mxu0 %v880
  %v1054 = vpop.f32.mrf.mxu0
  %v1055 = vadd.f32 %v726, %v1054
  %v1056 = vpop.f32.mrf.mxu0
  %1057 = vmatprep.mubr.f32.mxu0 0.0
  %1058 = vmatmul.mubr.f32.gmra.mxu0 %v883
  %v1059 = vpop.f32.mrf.mxu0
  %v1060 = vadd.f32 %v731, %v1059
  %v1061 = vpop.f32.mrf.mxu0
  %1062 = vmatprep.mubr.f32.mxu0 0.0
  %1063 = vmatmul.mubr.f32.gmra.mxu0 %v886
  %v1064 = vpop.f32.mrf.mxu0
  %v1065 = vadd.f32 %v736, %v1064
  %v1066 = vpop.f32.mrf.mxu0
  %1067 = vmatprep.mubr.f32.mxu0 0.0
  %1068 = vmatmul.mubr.f32.gmra.mxu0 %v889
  %v1069 = vpop.f32.mrf.mxu0
  %v1070 = vadd.f32 %v741, %v1069
  %v1071 = vpop.f32.mrf.mxu0
  %1072 = vmatprep.mubr.f32.mxu0 0.0
  %1073 = vmatmul.mubr.f32.gmra.mxu0 %v892
  %v1074 = vpop.f32.mrf.mxu0
  %v1075 = vadd.f32 %v746, %v1074
  %v1076 = vpop.f32.mrf.mxu0
  %1077 = vmatprep.mubr.f32.mxu0 0.0
  %1078 = vmatmul.mubr.f32.gmra.mxu0 %v895
  %v1079 = vpop.f32.mrf.mxu0
  %v1080 = vadd.f32 %v751, %v1079
  %v1081 = vpop.f32.mrf.mxu0
  %1082 = vmatprep.mubr.f32.mxu0 0.0
  %1083 = vmatmul.mubr.f32.gmra.mxu0 %v898
  %v1084 = vpop.f32.mrf.mxu0
  %v1085 = vadd.f32 %v756, %v1084
  %v1086 = vpop.f32.mrf.mxu0
  %1087 = vmatprep.mubr.f32.mxu0 0.0
  %1088 = vmatmul.mubr.f32.gmra.mxu0 %v901
  %v1089 = vpop.f32.mrf.mxu0
  %v1090 = vadd.f32 %v761, %v1089
  %v1091 = vpop.f32.mrf.mxu0
  %1092 = vmatprep.mubr.f32.mxu0 0.0
  %1093 = vmatmul.mubr.f32.gmra.mxu0 %v904
  %v1094 = vpop.f32.mrf.mxu0
  %v1095 = vadd.f32 %v766, %v1094
  %v1096 = vpop.f32.mrf.mxu0
  %1097 = vmatprep.mubr.f32.mxu0 0.0
  %1098 = vmatmul.mubr.f32.gmra.mxu0 %v907
  %v1099 = vpop.f32.mrf.mxu0
  %v1100 = vadd.f32 %v771, %v1099
  %v1101 = vpop.f32.mrf.mxu0
  %1102 = vmatprep.mubr.f32.mxu0 0.0
  %1103 = vmatmul.mubr.f32.gmra.mxu0 %v910
  %v1104 = vpop.f32.mrf.mxu0
  %v1105 = vadd.f32 %v776, %v1104
  %v1106 = vpop.f32.mrf.mxu0
  %1107 = vmatprep.mubr.f32.mxu0 0.0
  %1108 = vmatmul.mubr.f32.gmra.mxu0 %v913
  %v1109 = vpop.f32.mrf.mxu0
  %v1110 = vadd.f32 %v781, %v1109
  %v1111 = vpop.f32.mrf.mxu0
  %1112 = vmatprep.mubr.f32.mxu0 0.0
  %1113 = vmatmul.mubr.f32.gmra.mxu0 %v916
  %v1114 = vpop.f32.mrf.mxu0
  %v1115 = vadd.f32 %v786, %v1114
  %v1116 = vpop.f32.mrf.mxu0
  %1117 = vmatprep.mubr.f32.mxu0 0.0
  %1118 = vmatmul.mubr.f32.gmra.mxu0 %v919
  %v1119 = vpop.f32.mrf.mxu0
  %v1120 = vadd.f32 %v791, %v1119
  %v1121 = vpop.f32.mrf.mxu0
  %1122 = vmatprep.mubr.f32.mxu0 0.0
  %1123 = vmatmul.mubr.f32.gmra.mxu0 %v922
  %v1124 = vpop.f32.mrf.mxu0
  %v1125 = vadd.f32 %v796, %v1124
  %v1126 = vpop.f32.mrf.mxu0
  %1127 = vmatprep.mubr.f32.mxu0 0.0
  %1128 = vmatmul.mubr.f32.gmra.mxu0 %v925
  %v1129 = vpop.f32.mrf.mxu0
  %v1130 = vadd.f32 %v801, %v1129
  %v1131 = vpop.f32.mrf.mxu0
  %1132 = vmatprep.mubr.f32.mxu0 0.0
  %1133 = vmatmul.mubr.f32.gmra.mxu0 %v928
  %v1134 = vpop.f32.mrf.mxu0
  %v1135 = vadd.f32 %v806, %v1134
  %v1136 = vpop.f32.mrf.mxu0
  %1137 = vmatprep.mubr.f32.mxu0 0.0
  %1138 = vmatmul.mubr.f32.gmra.mxu0 %v931
  %v1139 = vpop.f32.mrf.mxu0
  %v1140 = vadd.f32 %v811, %v1139
  %v1141 = vpop.f32.mrf.mxu0
  %1142 = vmatprep.mubr.f32.mxu0 0.0
  %1143 = vmatmul.mubr.f32.gmra.mxu0 %v934
  %v1144 = vpop.f32.mrf.mxu0
  %v1145 = vadd.f32 %v816, %v1144
  %v1146 = vpop.f32.mrf.mxu0
  %1147 = vmatprep.mubr.f32.mxu0 0.0
  %1148 = vmatmul.mubr.f32.gmra.mxu0 %v937
  %v1149 = vpop.f32.mrf.mxu0
  %v1150 = vadd.f32 %v821, %v1149
  %v1151 = vpop.f32.mrf.mxu0
  %1152 = vmatprep.mubr.f32.mxu0 0.0
  %1153 = vmatmul.mubr.f32.gmra.mxu0 %v940
  %v1154 = vpop.f32.mrf.mxu0
  %v1155 = vadd.f32 %v826, %v1154
  %v1156 = vpop.f32.mrf.mxu0
  %1157 = vmatprep.mubr.f32.mxu0 0.0
  %1158 = vmatmul.mubr.f32.gmra.mxu0 %v943
  %v1159 = vpop.f32.mrf.mxu0
  %v1160 = vadd.f32 %v831, %v1159
  %v1161 = vpop.f32.mrf.mxu0
  %1162 = vmatprep.mubr.f32.mxu0 0.0
  %1163 = vmatmul.mubr.f32.gmra.mxu0 %v946
  %v1164 = vpop.f32.mrf.mxu0
  %v1165 = vadd.f32 %v836, %v1164
  %v1166 = vpop.f32.mrf.mxu0
  %1167 = vmatprep.mubr.f32.mxu0 0.0
  %1168 = vmatmul.mubr.f32.gmra.mxu0 %v949
  %v1169 = vpop.f32.mrf.mxu0
  %v1170 = vadd.f32 %v841, %v1169
  %v1171 = vpop.f32.mrf.mxu0
  %1172 = vmatprep.mubr.f32.mxu0 0.0
  %1173 = vmatmul.mubr.f32.gmra.mxu0 %v952
  %v1174 = vpop.f32.mrf.mxu0
  %v1175 = vadd.f32 %v846, %v1174
  %v1176 = vpop.f32.mrf.mxu0
  %1177 = vmatprep.mubr.f32.mxu0 0.0
  %1178 = vmatmul.mubr.f32.gmra.mxu0 %v955
  %v1179 = vpop.f32.mrf.mxu0
  %v1180 = vadd.f32 %v851, %v1179
  %v1181 = vpop.f32.mrf.mxu0
  %1182 = vmatprep.mubr.f32.mxu0 0.0
  %1183 = vmatmul.mubr.f32.gmra.mxu0 %v958
  %v1184 = vpop.f32.mrf.mxu0
  %v1185 = vadd.f32 %v856, %v1184
  %v1186 = vpop.f32.mrf.mxu0
  %1187 = vmatprep.mubr.f32.mxu0 0.0
  %1188 = vmatmul.mubr.f32.gmra.mxu0 %v961
  %v1189 = vpop.f32.mrf.mxu0
  %v1190 = vadd.f32 %v861, %v1189
  %v1191 = vpop.f32.mrf.mxu0
  %1192 = vdwg.mxu0
  %v1193 = vlaneseq
  %v1194 = vshrl.u32 %v1193, 7
  %v1195 = vsub.s32 0, %v1194
  %v1196 = vrot.slane %v468, %v1195
  %v1197 = vadd.f32 %v1030, %v1196
  %v1198 = vadd.f32 %v1035, %v1196
  %v1199 = vadd.f32 %v1040, %v1196
  %v1200 = vadd.f32 %v1045, %v1196
  %v1201 = vadd.f32 %v1050, %v1196
  %v1202 = vadd.f32 %v1055, %v1196
  %v1203 = vadd.f32 %v1060, %v1196
  %v1204 = vadd.f32 %v1065, %v1196
  %v1205 = vadd.f32 %v1070, %v1196
  %v1206 = vadd.f32 %v1075, %v1196
  %v1207 = vadd.f32 %v1080, %v1196
  %v1208 = vadd.f32 %v1085, %v1196
  %v1209 = vadd.f32 %v1090, %v1196
  %v1210 = vadd.f32 %v1095, %v1196
  %v1211 = vadd.f32 %v1100, %v1196
  %v1212 = vadd.f32 %v1105, %v1196
  %v1213 = vadd.f32 %v1110, %v1196
  %v1214 = vadd.f32 %v1115, %v1196
  %v1215 = vadd.f32 %v1120, %v1196
  %v1216 = vadd.f32 %v1125, %v1196
  %v1217 = vadd.f32 %v1130, %v1196
  %v1218 = vadd.f32 %v1135, %v1196
  %v1219 = vadd.f32 %v1140, %v1196
  %v1220 = vadd.f32 %v1145, %v1196
  %v1221 = vadd.f32 %v1150, %v1196
  %v1222 = vadd.f32 %v1155, %v1196
  %v1223 = vadd.f32 %v1160, %v1196
  %v1224 = vadd.f32 %v1165, %v1196
  %v1225 = vadd.f32 %v1170, %v1196
  %v1226 = vadd.f32 %v1175, %v1196
  %v1227 = vadd.f32 %v1180, %v1196
  %v1228 = vadd.f32 %v1185, %v1196
  %v1229 = vadd.f32 %v1190, %v1196
  %v1230 = vmax.f32 %v1197, 0.0
  %v1231 = vmax.f32 %v1198, 0.0
  %v1232 = vmax.f32 %v1199, 0.0
  %v1233 = vmax.f32 %v1200, 0.0
  %v1234 = vmax.f32 %v1201, 0.0
  %v1235 = vmax.f32 %v1202, 0.0
  %v1236 = vmax.f32 %v1203, 0.0
  %v1237 = vmax.f32 %v1204, 0.0
  %v1238 = vmax.f32 %v1205, 0.0
  %v1239 = vmax.f32 %v1206, 0.0
  %v1240 = vmax.f32 %v1207, 0.0
  %v1241 = vmax.f32 %v1208, 0.0
  %v1242 = vmax.f32 %v1209, 0.0
  %v1243 = vmax.f32 %v1210, 0.0
  %v1244 = vmax.f32 %v1211, 0.0
  %v1245 = vmax.f32 %v1212, 0.0
  %v1246 = vmax.f32 %v1213, 0.0
  %v1247 = vmax.f32 %v1214, 0.0
  %v1248 = vmax.f32 %v1215, 0.0
  %v1249 = vmax.f32 %v1216, 0.0
  %v1250 = vmax.f32 %v1217, 0.0
  %v1251 = vmax.f32 %v1218, 0.0
  %v1252 = vmax.f32 %v1219, 0.0
  %v1253 = vmax.f32 %v1220, 0.0
  %v1254 = vmax.f32 %v1221, 0.0
  %v1255 = vmax.f32 %v1222, 0.0
  %v1256 = vmax.f32 %v1223, 0.0
  %v1257 = vmax.f32 %v1224, 0.0
  %v1258 = vmax.f32 %v1225, 0.0
  %v1259 = vmax.f32 %v1226, 0.0
  %v1260 = vmax.f32 %v1227, 0.0
  %v1261 = vmax.f32 %v1228, 0.0
  %v1262 = vmax.f32 %v1229, 0.0
  %1263 = vst.msk [vmem:[#allocation3] sm:$0xff] %vm429, %v1230
  %1264 = vst.msk [vmem:[#allocation3 + $0x8] sm:$0xff] %vm429, %v1231
  %1265 = vst.msk [vmem:[#allocation3 + $0x10] sm:$0xff] %vm429, %v1232
  %1266 = vst.msk [vmem:[#allocation3 + $0x18] sm:$0xff] %vm429, %v1233
  %1267 = vst.msk [vmem:[#allocation3 + $0x20] sm:$0xff] %vm429, %v1234
  %1268 = vst.msk [vmem:[#allocation3 + $0x28] sm:$0xff] %vm429, %v1235
  %1269 = vst.msk [vmem:[#allocation3 + $0x30] sm:$0xff] %vm429, %v1236
  %1270 = vst.msk [vmem:[#allocation3 + $0x38] sm:$0xff] %vm429, %v1237
  %1271 = vst.msk [vmem:[#allocation3 + $0x40] sm:$0xff] %vm429, %v1238
  %1272 = vst.msk [vmem:[#allocation3 + $0x48] sm:$0xff] %vm429, %v1239
  %1273 = vst.msk [vmem:[#allocation3 + $0x50] sm:$0xff] %vm429, %v1240
  %1274 = vst.msk [vmem:[#allocation3 + $0x58] sm:$0xff] %vm429, %v1241
  %1275 = vst.msk [vmem:[#allocation3 + $0x60] sm:$0xff] %vm429, %v1242
  %1276 = vst.msk [vmem:[#allocation3 + $0x68] sm:$0xff] %vm429, %v1243
  %1277 = vst.msk [vmem:[#allocation3 + $0x70] sm:$0xff] %vm429, %v1244
  %1278 = vst.msk [vmem:[#allocation3 + $0x78] sm:$0xff] %vm429, %v1245
  %1279 = vst.msk [vmem:[#allocation3 + $0x80] sm:$0xff] %vm429, %v1246
  %1280 = vst.msk [vmem:[#allocation3 + $0x88] sm:$0xff] %vm429, %v1247
  %1281 = vst.msk [vmem:[#allocation3 + $0x90] sm:$0xff] %vm429, %v1248
  %1282 = vst.msk [vmem:[#allocation3 + $0x98] sm:$0xff] %vm429, %v1249
  %1283 = vst.msk [vmem:[#allocation3 + $0xa0] sm:$0xff] %vm429, %v1250
  %1284 = vst.msk [vmem:[#allocation3 + $0xa8] sm:$0xff] %vm429, %v1251
  %1285 = vst.msk [vmem:[#allocation3 + $0xb0] sm:$0xff] %vm429, %v1252
  %1286 = vst.msk [vmem:[#allocation3 + $0xb8] sm:$0xff] %vm429, %v1253
  %1287 = vst.msk [vmem:[#allocation3 + $0xc0] sm:$0xff] %vm429, %v1254
  %1288 = vst.msk [vmem:[#allocation3 + $0xc8] sm:$0xff] %vm429, %v1255
  %1289 = vst.msk [vmem:[#allocation3 + $0xd0] sm:$0xff] %vm429, %v1256
  %1290 = vst.msk [vmem:[#allocation3 + $0xd8] sm:$0xff] %vm429, %v1257
  %1291 = vst.msk [vmem:[#allocation3 + $0xe0] sm:$0xff] %vm429, %v1258
  %1292 = vst.msk [vmem:[#allocation3 + $0xe8] sm:$0xff] %vm429, %v1259
  %1293 = vst.msk [vmem:[#allocation3 + $0xf0] sm:$0xff] %vm429, %v1260
  %1294 = vst.msk [vmem:[#allocation3 + $0xf8] sm:$0xff] %vm429, %v1261
  %vm1295 = vcmask 125952
  %1296 = vst.msk [vmem:[#allocation3 + $0x100] sm:$0xf] %vm1295, %v1262
  %v1297 = vld [vmem:[#allocation3] sm:$0xff]
  %v1298 = vld [vmem:[#allocation3 + $0x8] sm:$0xff]
  %v1299 = vld [vmem:[#allocation3 + $0x10] sm:$0xff]
  %v1300 = vld [vmem:[#allocation3 + $0x18] sm:$0xff]
  %v1301 = vld [vmem:[#allocation3 + $0x20] sm:$0xff]
  %v1302 = vld [vmem:[#allocation3 + $0x28] sm:$0xff]
  %v1303 = vld [vmem:[#allocation3 + $0x30] sm:$0xff]
  %v1304 = vld [vmem:[#allocation3 + $0x38] sm:$0xff]
  %v1305 = vld [vmem:[#allocation3 + $0x40] sm:$0xff]
  %v1306 = vld [vmem:[#allocation3 + $0x48] sm:$0xff]
  %v1307 = vld [vmem:[#allocation3 + $0x50] sm:$0xff]
  %v1308 = vld [vmem:[#allocation3 + $0x58] sm:$0xff]
  %v1309 = vld [vmem:[#allocation3 + $0x60] sm:$0xff]
  %v1310 = vld [vmem:[#allocation3 + $0x68] sm:$0xff]
  %v1311 = vld [vmem:[#allocation3 + $0x70] sm:$0xff]
  %v1312 = vld [vmem:[#allocation3 + $0x78] sm:$0xff]
  %v1313 = vld [vmem:[#allocation3 + $0x80] sm:$0xff]
  %v1314 = vld [vmem:[#allocation3 + $0x88] sm:$0xff]
  %v1315 = vld [vmem:[#allocation3 + $0x90] sm:$0xff]
  %v1316 = vld [vmem:[#allocation3 + $0x98] sm:$0xff]
  %v1317 = vld [vmem:[#allocation3 + $0xa0] sm:$0xff]
  %v1318 = vld [vmem:[#allocation3 + $0xa8] sm:$0xff]
  %v1319 = vld [vmem:[#allocation3 + $0xb0] sm:$0xff]
  %v1320 = vld [vmem:[#allocation3 + $0xb8] sm:$0xff]
  %v1321 = vld [vmem:[#allocation3 + $0xc0] sm:$0xff]
  %v1322 = vld [vmem:[#allocation3 + $0xc8] sm:$0xff]
  %v1323 = vld [vmem:[#allocation3 + $0xd0] sm:$0xff]
  %v1324 = vld [vmem:[#allocation3 + $0xd8] sm:$0xff]
  %v1325 = vld [vmem:[#allocation3 + $0xe0] sm:$0xff]
  %v1326 = vld [vmem:[#allocation3 + $0xe8] sm:$0xff]
  %v1327 = vld [vmem:[#allocation3 + $0xf0] sm:$0x7f]
  %v1328 = vld [vmem:[#allocation3 + $0x1] sm:$0xff]
  %v1329 = vld [vmem:[#allocation3 + $0x9] sm:$0xff]
  %v1330 = vld [vmem:[#allocation3 + $0x11] sm:$0xff]
  %v1331 = vld [vmem:[#allocation3 + $0x19] sm:$0xff]
  %v1332 = vld [vmem:[#allocation3 + $0x21] sm:$0xff]
  %v1333 = vld [vmem:[#allocation3 + $0x29] sm:$0xff]
  %v1334 = vld [vmem:[#allocation3 + $0x31] sm:$0xff]
  %v1335 = vld [vmem:[#allocation3 + $0x39] sm:$0xff]
  %v1336 = vld [vmem:[#allocation3 + $0x41] sm:$0xff]
  %v1337 = vld [vmem:[#allocation3 + $0x49] sm:$0xff]
  %v1338 = vld [vmem:[#allocation3 + $0x51] sm:$0xff]
  %v1339 = vld [vmem:[#allocation3 + $0x59] sm:$0xff]
  %v1340 = vld [vmem:[#allocation3 + $0x61] sm:$0xff]
  %v1341 = vld [vmem:[#allocation3 + $0x69] sm:$0xff]
  %v1342 = vld [vmem:[#allocation3 + $0x71] sm:$0xff]
  %v1343 = vld [vmem:[#allocation3 + $0x79] sm:$0xff]
  %v1344 = vld [vmem:[#allocation3 + $0x81] sm:$0xff]
  %v1345 = vld [vmem:[#allocation3 + $0x89] sm:$0xff]
  %v1346 = vld [vmem:[#allocation3 + $0x91] sm:$0xff]
  %v1347 = vld [vmem:[#allocation3 + $0x99] sm:$0xff]
  %v1348 = vld [vmem:[#allocation3 + $0xa1] sm:$0xff]
  %v1349 = vld [vmem:[#allocation3 + $0xa9] sm:$0xff]
  %v1350 = vld [vmem:[#allocation3 + $0xb1] sm:$0xff]
  %v1351 = vld [vmem:[#allocation3 + $0xb9] sm:$0xff]
  %v1352 = vld [vmem:[#allocation3 + $0xc1] sm:$0xff]
  %v1353 = vld [vmem:[#allocation3 + $0xc9] sm:$0xff]
  %v1354 = vld [vmem:[#allocation3 + $0xd1] sm:$0xff]
  %v1355 = vld [vmem:[#allocation3 + $0xd9] sm:$0xff]
  %v1356 = vld [vmem:[#allocation3 + $0xe1] sm:$0xff]
  %v1357 = vld [vmem:[#allocation3 + $0xe9] sm:$0xff]
  %v1358 = vld [vmem:[#allocation3 + $0xf1] sm:$0x7f]
  %v1359 = vmax.f32 %v1297, %v1328
  %v1360 = vmax.f32 %v1298, %v1329
  %v1361 = vmax.f32 %v1299, %v1330
  %v1362 = vmax.f32 %v1300, %v1331
  %v1363 = vmax.f32 %v1301, %v1332
  %v1364 = vmax.f32 %v1302, %v1333
  %v1365 = vmax.f32 %v1303, %v1334
  %v1366 = vmax.f32 %v1304, %v1335
  %v1367 = vmax.f32 %v1305, %v1336
  %v1368 = vmax.f32 %v1306, %v1337
  %v1369 = vmax.f32 %v1307, %v1338
  %v1370 = vmax.f32 %v1308, %v1339
  %v1371 = vmax.f32 %v1309, %v1340
  %v1372 = vmax.f32 %v1310, %v1341
  %v1373 = vmax.f32 %v1311, %v1342
  %v1374 = vmax.f32 %v1312, %v1343
  %v1375 = vmax.f32 %v1313, %v1344
  %v1376 = vmax.f32 %v1314, %v1345
  %v1377 = vmax.f32 %v1315, %v1346
  %v1378 = vmax.f32 %v1316, %v1347
  %v1379 = vmax.f32 %v1317, %v1348
  %v1380 = vmax.f32 %v1318, %v1349
  %v1381 = vmax.f32 %v1319, %v1350
  %v1382 = vmax.f32 %v1320, %v1351
  %v1383 = vmax.f32 %v1321, %v1352
  %v1384 = vmax.f32 %v1322, %v1353
  %v1385 = vmax.f32 %v1323, %v1354
  %v1386 = vmax.f32 %v1324, %v1355
  %v1387 = vmax.f32 %v1325, %v1356
  %v1388 = vmax.f32 %v1326, %v1357
  %v1389 = vmax.f32 %v1327, %v1358
  %v1390 = vld [vmem:[#allocation3 + $0xc] sm:$0xff]
  %v1391 = vld [vmem:[#allocation3 + $0x14] sm:$0xff]
  %v1392 = vld [vmem:[#allocation3 + $0x1c] sm:$0xff]
  %v1393 = vld [vmem:[#allocation3 + $0x24] sm:$0xff]
  %v1394 = vld [vmem:[#allocation3 + $0x2c] sm:$0xff]
  %v1395 = vld [vmem:[#allocation3 + $0x34] sm:$0xff]
  %v1396 = vld [vmem:[#allocation3 + $0x3c] sm:$0xff]
  %v1397 = vld [vmem:[#allocation3 + $0x44] sm:$0xff]
  %v1398 = vld [vmem:[#allocation3 + $0x4c] sm:$0xff]
  %v1399 = vld [vmem:[#allocation3 + $0x54] sm:$0xff]
  %v1400 = vld [vmem:[#allocation3 + $0x5c] sm:$0xff]
  %v1401 = vld [vmem:[#allocation3 + $0x64] sm:$0xff]
  %v1402 = vld [vmem:[#allocation3 + $0x6c] sm:$0xff]
  %v1403 = vld [vmem:[#allocation3 + $0x74] sm:$0xff]
  %v1404 = vld [vmem:[#allocation3 + $0x7c] sm:$0xff]
  %v1405 = vld [vmem:[#allocation3 + $0x84] sm:$0xff]
  %v1406 = vld [vmem:[#allocation3 + $0x8c] sm:$0xff]
  %v1407 = vld [vmem:[#allocation3 + $0x94] sm:$0xff]
  %v1408 = vld [vmem:[#allocation3 + $0x9c] sm:$0xff]
  %v1409 = vld [vmem:[#allocation3 + $0xa4] sm:$0xff]
  %v1410 = vld [vmem:[#allocation3 + $0xac] sm:$0xff]
  %v1411 = vld [vmem:[#allocation3 + $0xb4] sm:$0xff]
  %v1412 = vld [vmem:[#allocation3 + $0xbc] sm:$0xff]
  %v1413 = vld [vmem:[#allocation3 + $0xc4] sm:$0xff]
  %v1414 = vld [vmem:[#allocation3 + $0xcc] sm:$0xff]
  %v1415 = vld [vmem:[#allocation3 + $0xd4] sm:$0xff]
  %v1416 = vld [vmem:[#allocation3 + $0xdc] sm:$0xff]
  %v1417 = vld [vmem:[#allocation3 + $0xe4] sm:$0xff]
  %v1418 = vld [vmem:[#allocation3 + $0xec] sm:$0xff]
  %v1419 = vld [vmem:[#allocation3 + $0xf4] sm:$0xff]
  %v1420 = vld [vmem:[#allocation3 + $0xfc] sm:$0x7f]
  %v1421 = vld [vmem:[#allocation3 + $0xd] sm:$0xff]
  %v1422 = vld [vmem:[#allocation3 + $0x15] sm:$0xff]
  %v1423 = vld [vmem:[#allocation3 + $0x1d] sm:$0xff]
  %v1424 = vld [vmem:[#allocation3 + $0x25] sm:$0xff]
  %v1425 = vld [vmem:[#allocation3 + $0x2d] sm:$0xff]
  %v1426 = vld [vmem:[#allocation3 + $0x35] sm:$0xff]
  %v1427 = vld [vmem:[#allocation3 + $0x3d] sm:$0xff]
  %v1428 = vld [vmem:[#allocation3 + $0x45] sm:$0xff]
  %v1429 = vld [vmem:[#allocation3 + $0x4d] sm:$0xff]
  %v1430 = vld [vmem:[#allocation3 + $0x55] sm:$0xff]
  %v1431 = vld [vmem:[#allocation3 + $0x5d] sm:$0xff]
  %v1432 = vld [vmem:[#allocation3 + $0x65] sm:$0xff]
  %v1433 = vld [vmem:[#allocation3 + $0x6d] sm:$0xff]
  %v1434 = vld [vmem:[#allocation3 + $0x75] sm:$0xff]
  %v1435 = vld [vmem:[#allocation3 + $0x7d] sm:$0xff]
  %v1436 = vld [vmem:[#allocation3 + $0x85] sm:$0xff]
  %v1437 = vld [vmem:[#allocation3 + $0x8d] sm:$0xff]
  %v1438 = vld [vmem:[#allocation3 + $0x95] sm:$0xff]
  %v1439 = vld [vmem:[#allocation3 + $0x9d] sm:$0xff]
  %v1440 = vld [vmem:[#allocation3 + $0xa5] sm:$0xff]
  %v1441 = vld [vmem:[#allocation3 + $0xad] sm:$0xff]
  %v1442 = vld [vmem:[#allocation3 + $0xb5] sm:$0xff]
  %v1443 = vld [vmem:[#allocation3 + $0xbd] sm:$0xff]
  %v1444 = vld [vmem:[#allocation3 + $0xc5] sm:$0xff]
  %v1445 = vld [vmem:[#allocation3 + $0xcd] sm:$0xff]
  %v1446 = vld [vmem:[#allocation3 + $0xd5] sm:$0xff]
  %v1447 = vld [vmem:[#allocation3 + $0xdd] sm:$0xff]
  %v1448 = vld [vmem:[#allocation3 + $0xe5] sm:$0xff]
  %v1449 = vld [vmem:[#allocation3 + $0xed] sm:$0xff]
  %v1450 = vld [vmem:[#allocation3 + $0xf5] sm:$0xff]
  %v1451 = vld [vmem:[#allocation3 + $0xfd] sm:$0x7f]
  %v1452 = vmax.f32 %v1390, %v1421
  %v1453 = vmax.f32 %v1391, %v1422
  %v1454 = vmax.f32 %v1392, %v1423
  %v1455 = vmax.f32 %v1393, %v1424
  %v1456 = vmax.f32 %v1394, %v1425
  %v1457 = vmax.f32 %v1395, %v1426
  %v1458 = vmax.f32 %v1396, %v1427
  %v1459 = vmax.f32 %v1397, %v1428
  %v1460 = vmax.f32 %v1398, %v1429
  %v1461 = vmax.f32 %v1399, %v1430
  %v1462 = vmax.f32 %v1400, %v1431
  %v1463 = vmax.f32 %v1401, %v1432
  %v1464 = vmax.f32 %v1402, %v1433
  %v1465 = vmax.f32 %v1403, %v1434
  %v1466 = vmax.f32 %v1404, %v1435
  %v1467 = vmax.f32 %v1405, %v1436
  %v1468 = vmax.f32 %v1406, %v1437
  %v1469 = vmax.f32 %v1407, %v1438
  %v1470 = vmax.f32 %v1408, %v1439
  %v1471 = vmax.f32 %v1409, %v1440
  %v1472 = vmax.f32 %v1410, %v1441
  %v1473 = vmax.f32 %v1411, %v1442
  %v1474 = vmax.f32 %v1412, %v1443
  %v1475 = vmax.f32 %v1413, %v1444
  %v1476 = vmax.f32 %v1414, %v1445
  %v1477 = vmax.f32 %v1415, %v1446
  %v1478 = vmax.f32 %v1416, %v1447
  %v1479 = vmax.f32 %v1417, %v1448
  %v1480 = vmax.f32 %v1418, %v1449
  %v1481 = vmax.f32 %v1419, %v1450
  %v1482 = vmax.f32 %v1420, %v1451
  %v1483 = vmax.f32 %v1359, %v1452
  %v1484 = vmax.f32 %v1360, %v1453
  %v1485 = vmax.f32 %v1361, %v1454
  %v1486 = vmax.f32 %v1362, %v1455
  %v1487 = vmax.f32 %v1363, %v1456
  %v1488 = vmax.f32 %v1364, %v1457
  %v1489 = vmax.f32 %v1365, %v1458
  %v1490 = vmax.f32 %v1366, %v1459
  %v1491 = vmax.f32 %v1367, %v1460
  %v1492 = vmax.f32 %v1368, %v1461
  %v1493 = vmax.f32 %v1369, %v1462
  %v1494 = vmax.f32 %v1370, %v1463
  %v1495 = vmax.f32 %v1371, %v1464
  %v1496 = vmax.f32 %v1372, %v1465
  %v1497 = vmax.f32 %v1373, %v1466
  %v1498 = vmax.f32 %v1374, %v1467
  %v1499 = vmax.f32 %v1375, %v1468
  %v1500 = vmax.f32 %v1376, %v1469
  %v1501 = vmax.f32 %v1377, %v1470
  %v1502 = vmax.f32 %v1378, %v1471
  %v1503 = vmax.f32 %v1379, %v1472
  %v1504 = vmax.f32 %v1380, %v1473
  %v1505 = vmax.f32 %v1381, %v1474
  %v1506 = vmax.f32 %v1382, %v1475
  %v1507 = vmax.f32 %v1383, %v1476
  %v1508 = vmax.f32 %v1384, %v1477
  %v1509 = vmax.f32 %v1385, %v1478
  %v1510 = vmax.f32 %v1386, %v1479
  %v1511 = vmax.f32 %v1387, %v1480
  %v1512 = vmax.f32 %v1388, %v1481
  %v1513 = vmax.f32 %v1389, %v1482
  %v1514 = vld [vmem:[%s1 + $0x50] sm:$0xff]
  %v1515 = vld [vmem:[%s1 + $0x58] sm:$0xff]
  %v1516 = vld [vmem:[%s1 + $0x60] sm:$0xff]
  %v1517 = vld [vmem:[%s1 + $0x68] sm:$0xff]
  %v1518 = vld [vmem:[%s1 + $0x70] sm:$0xff]
  %v1519 = vld [vmem:[%s1 + $0x78] sm:$0xff]
  %v1520 = vld [vmem:[%s1 + $0x80] sm:$0xff]
  %v1521 = vld [vmem:[%s1 + $0x88] sm:$0xff]
  %v1522 = vld [vmem:[%s1 + $0x90] sm:$0xff]
  %v1523 = vld [vmem:[%s1 + $0x98] sm:$0xff]
  %v1524 = vld [vmem:[%s1 + $0xa0] sm:$0xff]
  %v1525 = vld [vmem:[%s1 + $0xa8] sm:$0xff]
  %v1526 = vld [vmem:[%s1 + $0xb0] sm:$0xff]
  %v1527 = vld [vmem:[%s1 + $0xb8] sm:$0xff]
  %v1528 = vld [vmem:[%s1 + $0xc0] sm:$0xff]
  %v1529 = vld [vmem:[%s1 + $0xc8] sm:$0xff]
  %v1530 = vld [vmem:[%s1 + $0xd0] sm:$0xff]
  %v1531 = vld [vmem:[%s1 + $0xd8] sm:$0xff]
  %v1532 = vld [vmem:[%s1 + $0xe0] sm:$0xff]
  %v1533 = vld [vmem:[%s1 + $0xe8] sm:$0xff]
  %v1534 = vld [vmem:[%s1 + $0xf0] sm:$0xff]
  %v1535 = vld [vmem:[%s1 + $0xf8] sm:$0xff]
  %v1536 = vld [vmem:[%s1 + $0x100] sm:$0xff]
  %v1537 = vld [vmem:[%s1 + $0x108] sm:$0xff]
  %v1538 = vld [vmem:[%s1 + $0x110] sm:$0xff]
  %v1539 = vld [vmem:[%s1 + $0x118] sm:$0xff]
  %v1540 = vld [vmem:[%s1 + $0x120] sm:$0xff]
  %v1541 = vld [vmem:[%s1 + $0x128] sm:$0xff]
  %v1542 = vld [vmem:[%s1 + $0x130] sm:$0xff]
  %v1543 = vld [vmem:[%s1 + $0x138] sm:$0xff]
  %v1544 = vld [vmem:[%s1 + $0x140] sm:$0x7f]
  %v1545 = vmul.f32 %v1483, %v1514
  %v1546 = vmul.f32 %v1484, %v1515
  %v1547 = vmul.f32 %v1485, %v1516
  %v1548 = vmul.f32 %v1486, %v1517
  %v1549 = vmul.f32 %v1487, %v1518
  %v1550 = vmul.f32 %v1488, %v1519
  %v1551 = vmul.f32 %v1489, %v1520
  %v1552 = vmul.f32 %v1490, %v1521
  %v1553 = vmul.f32 %v1491, %v1522
  %v1554 = vmul.f32 %v1492, %v1523
  %v1555 = vmul.f32 %v1493, %v1524
  %v1556 = vmul.f32 %v1494, %v1525
  %v1557 = vmul.f32 %v1495, %v1526
  %v1558 = vmul.f32 %v1496, %v1527
  %v1559 = vmul.f32 %v1497, %v1528
  %v1560 = vmul.f32 %v1498, %v1529
  %v1561 = vmul.f32 %v1499, %v1530
  %v1562 = vmul.f32 %v1500, %v1531
  %v1563 = vmul.f32 %v1501, %v1532
  %v1564 = vmul.f32 %v1502, %v1533
  %v1565 = vmul.f32 %v1503, %v1534
  %v1566 = vmul.f32 %v1504, %v1535
  %v1567 = vmul.f32 %v1505, %v1536
  %v1568 = vmul.f32 %v1506, %v1537
  %v1569 = vmul.f32 %v1507, %v1538
  %v1570 = vmul.f32 %v1508, %v1539
  %v1571 = vmul.f32 %v1509, %v1540
  %v1572 = vmul.f32 %v1510, %v1541
  %v1573 = vmul.f32 %v1511, %v1542
  %v1574 = vmul.f32 %v1512, %v1543
  %v1575 = vmul.f32 %v1513, %v1544
  %v1576 = vsel %vm429, %v1545, 0.0
  %v1577 = vsel %vm429, %v1546, 0.0
  %v1578 = vadd.f32 %v1576, %v1577
  %v1579 = vsel %vm429, %v1547, 0.0
  %v1580 = vadd.f32 %v1578, %v1579
  %v1581 = vsel %vm429, %v1548, 0.0
  %v1582 = vadd.f32 %v1580, %v1581
  %v1583 = vsel %vm429, %v1549, 0.0
  %v1584 = vadd.f32 %v1582, %v1583
  %v1585 = vsel %vm429, %v1550, 0.0
  %v1586 = vadd.f32 %v1584, %v1585
  %v1587 = vsel %vm429, %v1551, 0.0
  %v1588 = vadd.f32 %v1586, %v1587
  %v1589 = vsel %vm429, %v1552, 0.0
  %v1590 = vadd.f32 %v1588, %v1589
  %v1591 = vsel %vm429, %v1553, 0.0
  %v1592 = vadd.f32 %v1590, %v1591
  %v1593 = vsel %vm429, %v1554, 0.0
  %v1594 = vadd.f32 %v1592, %v1593
  %v1595 = vsel %vm429, %v1555, 0.0
  %v1596 = vadd.f32 %v1594, %v1595
  %v1597 = vsel %vm429, %v1556, 0.0
  %v1598 = vadd.f32 %v1596, %v1597
  %v1599 = vsel %vm429, %v1557, 0.0
  %v1600 = vadd.f32 %v1598, %v1599
  %v1601 = vsel %vm429, %v1558, 0.0
  %v1602 = vadd.f32 %v1600, %v1601
  %v1603 = vsel %vm429, %v1559, 0.0
  %v1604 = vadd.f32 %v1602, %v1603
  %v1605 = vsel %vm429, %v1560, 0.0
  %v1606 = vadd.f32 %v1604, %v1605
  %v1607 = vsel %vm429, %v1561, 0.0
  %v1608 = vadd.f32 %v1606, %v1607
  %v1609 = vrot.slane %v1608, 4
  %v1610 = vadd.f32 %v1608, %v1609
  %v1611 = vrot.slane %v1610, 2
  %v1612 = vadd.f32 %v1610, %v1611
  %v1613 = vrot.slane %v1612, 1
  %v1614 = vadd.f32 %v1612, %v1613
  %v1615 = vsel %vm429, %v1562, 0.0
  %v1616 = vsel %vm429, %v1563, 0.0
  %v1617 = vadd.f32 %v1615, %v1616
  %v1618 = vsel %vm429, %v1564, 0.0
  %v1619 = vadd.f32 %v1617, %v1618
  %v1620 = vsel %vm429, %v1565, 0.0
  %v1621 = vadd.f32 %v1619, %v1620
  %v1622 = vsel %vm429, %v1566, 0.0
  %v1623 = vadd.f32 %v1621, %v1622
  %v1624 = vsel %vm429, %v1567, 0.0
  %v1625 = vadd.f32 %v1623, %v1624
  %v1626 = vsel %vm429, %v1568, 0.0
  %v1627 = vadd.f32 %v1625, %v1626
  %v1628 = vsel %vm429, %v1569, 0.0
  %v1629 = vadd.f32 %v1627, %v1628
  %v1630 = vsel %vm429, %v1570, 0.0
  %v1631 = vadd.f32 %v1629, %v1630
  %v1632 = vsel %vm429, %v1571, 0.0
  %v1633 = vadd.f32 %v1631, %v1632
  %v1634 = vsel %vm429, %v1572, 0.0
  %v1635 = vadd.f32 %v1633, %v1634
  %v1636 = vsel %vm429, %v1573, 0.0
  %v1637 = vadd.f32 %v1635, %v1636
  %v1638 = vsel %vm429, %v1574, 0.0
  %v1639 = vadd.f32 %v1637, %v1638
  %vm1640 = vcmask 129024
  %v1641 = vsel %vm1640, %v1575, 0.0
  %v1642 = vadd.f32 %v1639, %v1641
  %v1643 = vrot.slane %v1642, 4
  %v1644 = vadd.f32 %v1642, %v1643
  %v1645 = vrot.slane %v1644, 2
  %v1646 = vadd.f32 %v1644, %v1645
  %v1647 = vrot.slane %v1646, 1
  %v1648 = vadd.f32 %v1646, %v1647
  %vm1649 = vcmask 1040384
  %v1650 = vsel %vm1649, %v1614, %v1648
  %v1651 = vld [vmem:[%s1 + $0x48] sm:$0x1]
  %v1652 = vlaneseq
  %v1653 = vshrl.u32 %v1652, 7
  %v1654 = vsub.s32 0, %v1653
  %v1655 = vrot.slane %v1651, %v1654
  %v1656 = vadd.f32 %v1650, %v1655
  %vm1657 = vcmask 123904
  %v1658 = vsel %vm1657, %v1656, 0.0
  %1659 = vadd.xlane.f32.xlu0 %v1658
  %v1660 = vpop.xlane.xlu0 %1659
  %v1661 = vmax.f32 %v1660, -1000.0
  %v1662 = vmin.f32 %v1661, 1000.0
  %vm1663 = vcmask 1024
  %1664 = vst.msk [vmem:[%s2] sm:$0x3] %vm1663, %v1662
  // Predicated region
  $region10: #{net_forward.1} parent=0 // pred_check
    _
  $region11: #{net_forward.1} parent=0 // pred_check_branch
    %1666 = sbr.rel (0) target = $region13
  $region12: #{net_forward.1} parent=0 // pred_region
    _
  $region13: #{net_forward.1} parent=0 // pred_fallthru
    _
  // Predicated region
  $region14: #{net_forward.1} parent=0 // pred_check
    _
  $region15: #{net_forward.1} parent=0 // pred_check_branch
    %1668 = sbr.rel (0) target = $region17
  $region16: #{net_forward.1} parent=0 // pred_region
    _
  $region17: #{net_forward.1} parent=0 // pred_fallthru
    _

</llo_original>
